<compile_context>
chip_gen: v7x
topology: tpu7x:2x2x1
jax: 0.10.0
libtpu: 0.0.40
codegen_flags: <defaults>
</compile_context>

<pallas_src>
from functools import partial

import jax
import jax.numpy as jnp
from jax import lax
from jax.experimental import pallas as pl
from jax.experimental.pallas import tpu as pltpu


def _round_up(x, m):
    return ((x + m - 1) // m) * m


def _vmem_capacity_bytes():
    """Physical VMEM of the current TPU generation (conservative fallback: 64 MiB)."""
    try:
        cap = int(pltpu.get_tpu_info().vmem_capacity_bytes)
        if cap > 0:
            return cap
    except Exception:
        pass
    return 64 << 20


def _stats_kernel(x_ref, w_ref, s_ref, sum_acc, sq_acc, *, s_total):
    """Pass 1: per-channel sum / sum-of-squares of the conv output.

    Grid = (N, C, Tc): batch x parallel spatial chunk x sequential tile.
    x_ref:   (1, Cin, st)     input tile, native dtype (cast to bf16 in-kernel)
    w_ref:   (Cout, Cin)      bf16 1x1x1 conv weight
    s_ref:   (1, 1, Cout, 2)  f32 [sum, sumsq] per (n, chunk); written at last t only
    sum_acc: (Cout, 1) f32    VMEM scratch accumulators (avoid per-step narrow stores)
    sq_acc:  (Cout, 1) f32
    """
    c = pl.program_id(1)
    t = pl.program_id(2)
    nt = pl.num_programs(2)

    @pl.when(t == 0)
    def _():
        sum_acc[...] = jnp.zeros_like(sum_acc)
        sq_acc[...] = jnp.zeros_like(sq_acc)

    x = x_ref[0]                                   # (Cin, st)
    st = x.shape[1]
    # Mask columns past the true spatial extent (partial trailing tile): keeps the
    # statistics exact without ever padding x in HBM.
    lane = lax.broadcasted_iota(jnp.int32, (1, st), 1)
    valid = ((c * nt + t) * st + lane) < s_total
    xb = jnp.where(valid, x, 0.0).astype(jnp.bfloat16)

    y = jnp.dot(w_ref[...], xb, preferred_element_type=jnp.float32)   # (Cout, st)
    sum_acc[...] += jnp.sum(y, axis=1, keepdims=True)
    sq_acc[...] += jnp.sum(y * y, axis=1, keepdims=True)

    @pl.when(t == nt - 1)
    def _():
        s_ref[0, 0, :, 0:1] = sum_acc[...]
        s_ref[0, 0, :, 1:2] = sq_acc[...]


def _apply_kernel(x_ref, w_ref, scale_ref, shift_ref, o_ref):
    """Pass 2: 1x1x1 conv + fused BN affine + ReLU, lane-dense over spatial.

    x_ref:     (1, Cin, st)   native dtype (cast to bf16 in-kernel)
    w_ref:     (Cout, Cin)    bf16
    scale_ref: (Cout, 1) f32  gamma / sqrt(var + eps)
    shift_ref: (Cout, 1) f32  beta - mean * scale (conv bias folded away)
    o_ref:     (1, Cout, st)  out_dtype (bf16 default: halves the dominant write)
    """
    xb = x_ref[0].astype(jnp.bfloat16)
    y = jnp.dot(w_ref[...], xb, preferred_element_type=jnp.float32)   # (Cout, st)
    o_ref[0] = jnp.maximum(y * scale_ref[...] + shift_ref[...], 0.0).astype(o_ref.dtype)


def conv1x1x1_bn_relu(x, w, b, gamma, beta, eps=1e-5, out_dtype=jnp.bfloat16):
    """x: (N, Cin, D, H, W); w: (Cout, Cin, 1, 1, 1); b/gamma/beta: (Cout,)."""
    N, Cin, D, H, W = x.shape
    Cout = w.shape[0]
    S = D * H * W

    # NCDHW -> (N, Cin, S): contiguous reshape, no copy. x kept at its native dtype.
    x_flat = x.reshape(N, Cin, S)
    w2 = w.reshape(Cout, Cin).astype(jnp.bfloat16)
    # NOTE: conv bias `b` is intentionally unused in the kernels: with training-mode
    # batch statistics the BN mean shift cancels it exactly. It would have to be
    # re-added if this were reused with eval-mode running stats.

    # ---- generation-aware tile sizing ------------------------------------------
    cap = _vmem_capacity_bytes()                 # 64 MiB v7x, 128 MiB v5e/v6e
    ws_budget = min(cap // 2, 64 << 20)          # double-buffered working-set target
    vmem_limit = int(min((cap * 3) // 4, 100 << 20))

    in_item = jnp.dtype(x.dtype).itemsize
    out_item = jnp.dtype(out_dtype).itemsize
    # VMEM bytes per spatial lane-column (conservative; includes intermediates):
    #   pass 1: 2x x (dbl buf) + masked x + bf16 x + y + y*y
    per_lane_p1 = 2 * Cin * in_item + Cin * 4 + Cin * 2 + 2 * Cout * 4
    #   pass 2: 2x x (dbl buf) + bf16 x + 2x out (dbl buf) + y + affine temp
    per_lane_p2 = 2 * Cin * in_item + Cin * 2 + 2 * Cout * out_item + 2 * Cout * 4
    per_lane = max(per_lane_p1, per_lane_p2)
    fixed = 2 << 20                               # weights, scale/shift, accums, slack

    st = max(128, ((max(ws_budget - fixed, 0) // per_lane) // 128) * 128)
    st = min(st, _round_up(S, 128))               # small problems -> a single tile

    T_total = (S + st - 1) // st                  # sequential spatial tiles per batch
    # Parallel chunk axis so both v7x TensorCores get work even when N == 1
    # (harmless on single-TC v5e/v6e). Kept to an exact divisor for simple indexing.
    C = 2 if (T_total >= 2 and T_total % 2 == 0) else 1
    Tc = T_total // C

    # ---- pass 1: per-channel sum / sum-of-squares of the conv output ------------
    stats = pl.pallas_call(
        partial(_stats_kernel, s_total=S),
        out_shape=jax.ShapeDtypeStruct((N, C, Cout, 2), jnp.float32),
        grid=(N, C, Tc),
        in_specs=[
            pl.BlockSpec((1, Cin, st), lambda n, c, t: (n, 0, c * Tc + t)),
            pl.BlockSpec((Cout, Cin), lambda n, c, t: (0, 0)),
        ],
        out_specs=pl.BlockSpec((1, 1, Cout, 2), lambda n, c, t: (n, c, 0, 0)),
        scratch_shapes=[pltpu.VMEM((Cout, 1), jnp.float32),
                        pltpu.VMEM((Cout, 1), jnp.float32)],
        compiler_params=pltpu.CompilerParams(
            dimension_semantics=("parallel", "parallel", "arbitrary"),
            vmem_limit_bytes=vmem_limit),
    )(x_flat, w2)

    # ---- tiny BN finalization in the wrapper -------------------------------------
    s = jnp.sum(stats, axis=(0, 1))                 # (Cout, 2)
    n_valid = float(N * S)
    mean = s[:, 0] / n_valid
    var = s[:, 1] / n_valid - mean * mean           # biased variance (PyTorch BN)
    var = jnp.maximum(var, 0.0)                     # guard f32 cancellation
    scale = gamma.astype(jnp.float32) * lax.rsqrt(var + eps)
    shift = beta.astype(jnp.float32) - mean * scale

    # ---- pass 2: conv + BN affine + ReLU, lane-dense (Cout, st) output -----------
    out_flat = pl.pallas_call(
        _apply_kernel,
        out_shape=jax.ShapeDtypeStruct((N, Cout, S), out_dtype),
        grid=(N, T_total),
        in_specs=[
            pl.BlockSpec((1, Cin, st), lambda n, t: (n, 0, t)),
            pl.BlockSpec((Cout, Cin), lambda n, t: (0, 0)),
            pl.BlockSpec((Cout, 1), lambda n, t: (0, 0)),
            pl.BlockSpec((Cout, 1), lambda n, t: (0, 0)),
        ],
        out_specs=pl.BlockSpec((1, Cout, st), lambda n, t: (n, 0, t)),
        compiler_params=pltpu.CompilerParams(
            dimension_semantics=("parallel", "parallel"),
            vmem_limit_bytes=vmem_limit),
    )(x_flat, w2, scale.reshape(Cout, 1), shift.reshape(Cout, 1))

    return out_flat.reshape(N, Cout, D, H, W)       # free reshape, no slice copy


def reference(x, w, b, gamma, beta, eps=1e-5):
    """Pure-JAX reference matching the PyTorch forward (training-mode BN + ReLU)."""
    N, Cin, D, H, W = x.shape
    Cout = w.shape[0]
    y = jnp.einsum('oi,nidhw->nodhw',
                   w.reshape(Cout, Cin).astype(jnp.float32),
                   x.astype(jnp.float32))
    y = y + b[None, :, None, None, None]
    mean = jnp.mean(y, axis=(0, 2, 3, 4), keepdims=True)
    var = jnp.mean((y - mean) ** 2, axis=(0, 2, 3, 4), keepdims=True)  # biased
    y = (y - mean) * lax.rsqrt(var + eps)
    y = y * gamma[None, :, None, None, None] + beta[None, :, None, None, None]
    return jnp.maximum(y, 0.0)


if __name__ == "__main__":
    # TODO(synk): BatchNorm running-stat (momentum) updates are training-state
    # bookkeeping with no effect on the returned tensor; omitted.
    key = jax.random.PRNGKey(0)
    kx, kw, kb, kg, kbt = jax.random.split(key, 5)

    N, Cin, Cout, D, H, W = 2, 4, 8, 16, 16, 16
    x = jax.random.normal(kx, (N, Cin, D, H, W), dtype=jnp.float32)
    w = jax.random.normal(kw, (Cout, Cin, 1, 1, 1), dtype=jnp.float32) * (1.0 / Cin) ** 0.5
    b = 0.1 * jax.random.normal(kb, (Cout,), dtype=jnp.float32)
    gamma = 1.0 + 0.1 * jax.random.normal(kg, (Cout,), dtype=jnp.float32)
    beta = 0.1 * jax.random.normal(kbt, (Cout,), dtype=jnp.float32)

    out = conv1x1x1_bn_relu(x, w, b, gamma, beta)
    out = jax.block_until_ready(out)
    assert out.shape == (N, Cout, D, H, W), out.shape
    out32 = out.astype(jnp.float32)

    # Check vs reference fed the same bf16-rounded x / w: the residual is dominated
    # by the intentional bf16 OUTPUT quantization (ulp ~ 0.03 at |y| ~ 4-6), not by
    # kernel/statistics error.
    xq = x.astype(jnp.bfloat16).astype(jnp.float32)
    wq = w.astype(jnp.bfloat16).astype(jnp.float32)
    err_q = float(jnp.max(jnp.abs(out32 - reference(xq, wq, b, gamma, beta))))
    assert err_q < 5e-2, f"max abs error vs bf16-input reference too large: {err_q}"

    # Loose check vs the full-f32 reference (covers bf16 quantization of x / w / out).
    err_f = float(jnp.max(jnp.abs(out32 - reference(x, w, b, gamma, beta))))
    assert err_f < 1.5e-1, f"max abs error vs f32 reference too large: {err_f}"

    print("KERNEL_OK")
</pallas_src>

<mosaic_0001>
module attributes {stable_mosaic.version = 11 : i64} {
  func.func @_stats_kernel(%arg0: i32, %arg1: i32, %arg2: i32, %arg3: memref<1x4x4096xf32, #tpu.memory_space<vmem>>, %arg4: memref<8x4xbf16, #tpu.memory_space<vmem>>, %arg5: memref<1x1x8x2xf32, #tpu.memory_space<vmem>>, %arg6: memref<8x1xf32, #tpu.memory_space<vmem>>, %arg7: memref<8x1xf32, #tpu.memory_space<vmem>>) attributes {dimension_semantics = [#tpu.dimension_semantics<parallel>, #tpu.dimension_semantics<parallel>, #tpu.dimension_semantics<arbitrary>], iteration_bounds = array<i64: 2, 1, 1>, scalar_prefetch = 0 : i64, scratch_operands = 2 : i64, tpu.core_type = #tpu.core_type<tc>, window_params = [{transform_indices = @transform_0, window_bounds = array<i64: 1, 4, 4096>}, {pipeline_mode = #tpu.pipeline_mode<synchronous>, transform_indices = @transform_1, window_bounds = array<i64: 8, 4>}, {transform_indices = @transform_2, window_bounds = array<i64: 1, 1, 8, 2>}]} {
    %c0_i32 = arith.constant 0 : i32
    %0 = arith.cmpi eq, %arg2, %c0_i32 : i32
    %1 = arith.extui %0 : i1 to i32
    %c0_i32_0 = arith.constant 0 : i32
    %2 = arith.cmpi ne, %1, %c0_i32_0 : i32
    scf.if %2 {
      %cst_19 = arith.constant 0.000000e+00 : f32
      %34 = vector.broadcast %cst_19 : f32 to vector<8x1xf32>
      %c0_20 = arith.constant 0 : index
      %c0_21 = arith.constant 0 : index
      %35 = vector.load %arg6[%c0_20, %c0_21] : memref<8x1xf32, #tpu.memory_space<vmem>>, vector<8x1xf32>
      tpu.vector_store %arg6[%c0_20, %c0_21], %34 {strides = array<i32>} : memref<8x1xf32, #tpu.memory_space<vmem>>, vector<8x1xf32>,
      %cst_22 = arith.constant 0.000000e+00 : f32
      %36 = vector.broadcast %cst_22 : f32 to vector<8x1xf32>
      %c0_23 = arith.constant 0 : index
      %c0_24 = arith.constant 0 : index
      %37 = vector.load %arg7[%c0_23, %c0_24] : memref<8x1xf32, #tpu.memory_space<vmem>>, vector<8x1xf32>
      tpu.vector_store %arg7[%c0_23, %c0_24], %36 {strides = array<i32>} : memref<8x1xf32, #tpu.memory_space<vmem>>, vector<8x1xf32>,
    } else {
    }
    %c0 = arith.constant 0 : index
    %c0_1 = arith.constant 0 : index
    %c0_2 = arith.constant 0 : index
    %3 = vector.load %arg3[%c0, %c0_1, %c0_2] : memref<1x4x4096xf32, #tpu.memory_space<vmem>>, vector<1x4x4096xf32>
    %4 = vector.shape_cast %3 : vector<1x4x4096xf32> to vector<4x4096xf32>
    %5 = tpu.iota {dimensions = array<i32: 1>} : vector<1x4096xi32>
    %c1_i32 = arith.constant 1 : i32
    %6 = arith.muli %arg1, %c1_i32 : i32
    %7 = arith.addi %6, %arg2 : i32
    %c4096_i32 = arith.constant 4096 : i32
    %8 = arith.muli %7, %c4096_i32 : i32
    %9 = vector.broadcast %8 : i32 to vector<1x4096xi32>
    %10 = arith.addi %9, %5 : vector<1x4096xi32>
    %c4096_i32_3 = arith.constant 4096 : i32
    %11 = vector.broadcast %c4096_i32_3 : i32 to vector<1x4096xi32>
    %12 = arith.cmpi slt, %10, %11 : vector<1x4096xi32>
    %cst = arith.constant 0.000000e+00 : f32
    %13 = vector.shape_cast %12 : vector<1x4096xi1> to vector<1x4096xi1>
    %14 = vector.broadcast %13 : vector<1x4096xi1> to vector<4x4096xi1>
    %15 = vector.broadcast %cst : f32 to vector<4x4096xf32>
    %16 = arith.select %14, %4, %15 : vector<4x4096xi1>, vector<4x4096xf32>
    %17 = arith.truncf %16 : vector<4x4096xf32> to vector<4x4096xbf16>
    %c0_4 = arith.constant 0 : index
    %c0_5 = arith.constant 0 : index
    %18 = vector.load %arg4[%c0_4, %c0_5] : memref<8x4xbf16, #tpu.memory_space<vmem>>, vector<8x4xbf16>
    %cst_6 = arith.constant dense<0.000000e+00> : vector<8x4096xf32>
    %19 = tpu.matmul %18, %17, %cst_6 {dimension_numbers = #tpu.dot_dimension_numbers<[1], [0], [0], [1], [0, 0, 1, 1], [], []>} : vector<8x4xbf16>, vector<4x4096xbf16>, vector<8x4096xf32> -> vector<8x4096xf32>
    %c0_7 = arith.constant 0 : index
    %c0_8 = arith.constant 0 : index
    %20 = vector.load %arg6[%c0_7, %c0_8] : memref<8x1xf32, #tpu.memory_space<vmem>>, vector<8x1xf32>
    %cst_9 = arith.constant dense<0.000000e+00> : vector<8xf32>
    %21 = vector.multi_reduction <add>, %19, %cst_9 [1] : vector<8x4096xf32> to vector<8xf32>
    %22 = vector.shape_cast %21 : vector<8xf32> to vector<8x1xf32>
    %23 = arith.addf %20, %22 : vector<8x1xf32>
    %c0_10 = arith.constant 0 : index
    %c0_11 = arith.constant 0 : index
    %24 = vector.load %arg6[%c0_10, %c0_11] : memref<8x1xf32, #tpu.memory_space<vmem>>, vector<8x1xf32>
    tpu.vector_store %arg6[%c0_10, %c0_11], %23 {strides = array<i32>} : memref<8x1xf32, #tpu.memory_space<vmem>>, vector<8x1xf32>,
    %c0_12 = arith.constant 0 : index
    %c0_13 = arith.constant 0 : index
    %25 = vector.load %arg7[%c0_12, %c0_13] : memref<8x1xf32, #tpu.memory_space<vmem>>, vector<8x1xf32>
    %26 = arith.mulf %19, %19 : vector<8x4096xf32>
    %cst_14 = arith.constant dense<0.000000e+00> : vector<8xf32>
    %27 = vector.multi_reduction <add>, %26, %cst_14 [1] : vector<8x4096xf32> to vector<8xf32>
    %28 = vector.shape_cast %27 : vector<8xf32> to vector<8x1xf32>
    %29 = arith.addf %25, %28 : vector<8x1xf32>
    %c0_15 = arith.constant 0 : index
    %c0_16 = arith.constant 0 : index
    %30 = vector.load %arg7[%c0_15, %c0_16] : memref<8x1xf32, #tpu.memory_space<vmem>>, vector<8x1xf32>
    tpu.vector_store %arg7[%c0_15, %c0_16], %29 {strides = array<i32>} : memref<8x1xf32, #tpu.memory_space<vmem>>, vector<8x1xf32>,
    %c0_i32_17 = arith.constant 0 : i32
    %31 = arith.cmpi eq, %arg2, %c0_i32_17 : i32
    %32 = arith.extui %31 : i1 to i32
    %c0_i32_18 = arith.constant 0 : i32
    %33 = arith.cmpi ne, %32, %c0_i32_18 : i32
    scf.if %33 {
      %c0_19 = arith.constant 0 : index
      %c0_20 = arith.constant 0 : index
      %34 = vector.load %arg6[%c0_19, %c0_20] : memref<8x1xf32, #tpu.memory_space<vmem>>, vector<8x1xf32>
      %c0_21 = arith.constant 0 : index
      %c0_22 = arith.constant 0 : index
      %c0_23 = arith.constant 0 : index
      %c0_24 = arith.constant 0 : index
      %35 = vector.load %arg5[%c0_21, %c0_22, %c0_23, %c0_24] : memref<1x1x8x2xf32, #tpu.memory_space<vmem>>, vector<1x1x8x1xf32>
      %36 = vector.shape_cast %35 : vector<1x1x8x1xf32> to vector<8x1xf32>
      %37 = vector.shape_cast %34 : vector<8x1xf32> to vector<1x1x8x1xf32>
      tpu.vector_store %arg5[%c0_21, %c0_22, %c0_23, %c0_24], %37 {strides = array<i32>} : memref<1x1x8x2xf32, #tpu.memory_space<vmem>>, vector<1x1x8x1xf32>,
      %c0_25 = arith.constant 0 : index
      %c0_26 = arith.constant 0 : index
      %38 = vector.load %arg7[%c0_25, %c0_26] : memref<8x1xf32, #tpu.memory_space<vmem>>, vector<8x1xf32>
      %c0_27 = arith.constant 0 : index
      %c0_28 = arith.constant 0 : index
      %c0_29 = arith.constant 0 : index
      %c1 = arith.constant 1 : index
      %39 = vector.load %arg5[%c0_27, %c0_28, %c0_29, %c1] : memref<1x1x8x2xf32, #tpu.memory_space<vmem>>, vector<1x1x8x1xf32>
      %40 = vector.shape_cast %39 : vector<1x1x8x1xf32> to vector<8x1xf32>
      %41 = vector.shape_cast %38 : vector<8x1xf32> to vector<1x1x8x1xf32>
      tpu.vector_store %arg5[%c0_27, %c0_28, %c0_29, %c1], %41 {strides = array<i32>} : memref<1x1x8x2xf32, #tpu.memory_space<vmem>>, vector<1x1x8x1xf32>,
    } else {
    }
    return
  }
  func.func @transform_0(%arg0: i32, %arg1: i32, %arg2: i32) -> (i32, i32, i32) {
    %c1_i32 = arith.constant 1 : i32
    %0 = arith.muli %arg1, %c1_i32 : i32
    %1 = arith.addi %0, %arg2 : i32
    %c0_i32 = arith.constant 0 : i32
    %c0_i32_0 = arith.constant 0 : i32
    return %arg0, %c0_i32, %1 : i32, i32, i32
  }
  func.func @transform_1(%arg0: i32, %arg1: i32, %arg2: i32) -> (i32, i32) {
    %c0_i32 = arith.constant 0 : i32
    %c0_i32_0 = arith.constant 0 : i32
    %c0_i32_1 = arith.constant 0 : i32
    return %c0_i32, %c0_i32_0 : i32, i32
  }
  func.func @transform_2(%arg0: i32, %arg1: i32, %arg2: i32) -> (i32, i32, i32, i32) {
    %c0_i32 = arith.constant 0 : i32
    %c0_i32_0 = arith.constant 0 : i32
    %c0_i32_1 = arith.constant 0 : i32
    return %arg0, %arg1, %c0_i32, %c0_i32_0 : i32, i32, i32, i32
  }
}

</mosaic_0001>

<llo_original>
// kernel: tpu_custom_call.1
$region0: #{tpu_custom_call.1}
  #allocation0 [shape = 'u32[]', space=smem, size = 0x4, offset = 0x4, fixed_abs, tag = 'smem constant byte address 0x4 - core index']
  #allocation1 [shape = 'u32[144,128]{1,0:T(1,128)}', space=vmem, size = 0x12000, scoped, tag = 'internal scratch']
  #allocation2 [shape = 'f32[8,1]{1,0:T(8,128)}', space=vmem, size = 0x1000, scoped, tag = 'scratch operand']
  #allocation3 [shape = 'f32[8,1]{1,0:T(8,128)}', space=vmem, size = 0x1000, scoped, tag = 'scratch operand']
  %s0 = inlined_call_operand.hbm [shape: f32[2,4,4096], index: 0, kind: input, shape index: {}]
  %s1 = inlined_call_operand.vmem [shape: bf16[8,4], index: 1, kind: input, shape index: {}]
  %s2 = inlined_call_operand.vmem [shape: f32[2,1,8,2], index: 2, kind: output, shape index: {}]
  %s3 = sld [smem:[#allocation0]]
  $region53: #{tpu_custom_call.1} parent=0
    _
  %s5 = ssub.s32 1, %s3
  %s6 = scalar_select 0, %s5, %s3
  $region1: #{tpu_custom_call.1} parent=0
    #allocation4 [shape = 'u8[131072]{0}', space=vmem, size = 0x20000, scoped, tag = 'input window, operand 0']
    #allocation5 [shape = 's32[2]{0}', space=sflag, size = 0x8, scoped, tag = 'scoped memory for tpu_custom_call.1']
    %7 = vsyncpa [#allocation5], 0
    %s8 = scalar_lea.sflag [#allocation5], 1
    %9 = vsyncpa %s8, 0
    loop: start=0, step=1, limit=4
    $region2: #{tpu_custom_call.1} parent=1 // loop_pre_header
      _
    $region3: #{tpu_custom_call.1} parent=1 // loop_header
      %s11 = sphi 0, %s15
      %p12 = scmp.ge.s32.totalorder %s11, 4
      %s18 = sphi 0, %s37
      %s19 = sphi 0, %s33
      %s20 = sphi 0, %s29
      %s21 = sphi 0, %s18
      %s22 = sphi 0, %s19
      %s23 = sphi 0, %s20
      %s24 = sphi 0, %s21
      %s25 = sphi 0, %s22
      %s26 = sphi 0, %s23
      %s44 = sphi 0, %s46
      %s47 = sphi 0, %s44
      %s48 = sphi 0, %s47
      %s64 = sphi 0, %s48
      %s68 = sphi 0, %s68
      %s70 = sphi 0, %s68
      %s71 = sphi 0, %s70
      %s85 = sphi 0, %s71
      %s93 = sphi 0, %s95
      %s96 = sphi 0, %s93
      %s97 = sphi 0, %s96
      %s113 = sphi 0, %s97
    $region4: #{tpu_custom_call.1} parent=1 // loop_header_branch
      %14 = sbr.rel (%p12) target = $region8
    $region5: #{tpu_custom_call.1} parent=1 // loop_body
      %s16 = ssub.s32 %s11, 1
      %s17 = ssub.s32 %s11, 2
      %s27 = sadd.s32 1, %s20
      %p28 = scmp.ge.s32.totalorder %s27, 1
      %s29 = scalar_select %p28, 0, %s27
      %s30 = sadd.s32 1, %s19
      %s31 = scalar_select %p28, %s30, %s19
      %p32 = scmp.ge.s32.totalorder %s31, 1
      %s33 = scalar_select %p32, 0, %s31
      %s34 = sadd.s32 1, %s18
      %s35 = scalar_select %p32, %s34, %s18
      %p36 = scmp.ge.s32.totalorder %s35, 2
      %s37 = scalar_select %p36, 0, %s35
      %s38 = sadd.s32 %s19, %s20
      %s39 = sadd.s32 %s33, %s29
      %s40 = ssub.s32 %s18, %s37
      %s41 = ssub.s32 %s38, %s39
      %s42 = sor.u32 %s40, %s41
      %p43 = scmp.eq.s32.totalorder %s42, 0
      %s45 = sadd.s32 %s44, 1
      %s46 = scalar_select %p43, %s44, %s45
      %p49 = pneg %p43
      %p50 = scmp.eq.s32.totalorder %s11, 1
      %p51 = por %p49, %p50
      %p52 = scmp.ne.s32.totalorder %s44, %s47
      %p53 = scmp.eq.s32.totalorder %s11, 0
      %p54 = por %p52, %p53
      %p55 = scmp.ne.s32.totalorder %s44, %s47
      %p56 = scmp.eq.s32.totalorder %s16, 1
      %p57 = por %p55, %p56
      %p58 = scmp.ne.s32.totalorder %s47, %s48
      %p59 = scmp.eq.s32.totalorder %s16, 0
      %p60 = por %p58, %p59
      %p61 = scmp.ne.s32.totalorder %s47, %s48
      %p62 = scmp.eq.s32.totalorder %s17, 1
      %p63 = por %p61, %p62
      %p65 = scmp.ne.s32.totalorder %s48, %s64
      %p66 = scmp.eq.s32.totalorder %s17, 0
      %p67 = por %p65, %p66
      %s69 = sadd.s32 %s68, 1
      %p72 = scmp.eq.s32.totalorder %s11, 1
      %p73 = scmp.ne.s32.totalorder %s68, %s70
      %p74 = scmp.eq.s32.totalorder %s11, 0
      %p75 = por %p73, %p74
      %p76 = scmp.ne.s32.totalorder %s68, %s70
      %p77 = scmp.eq.s32.totalorder %s16, 1
      %p78 = por %p76, %p77
      %p79 = scmp.ne.s32.totalorder %s70, %s71
      %p80 = scmp.eq.s32.totalorder %s16, 0
      %p81 = por %p79, %p80
      %p82 = scmp.ne.s32.totalorder %s70, %s71
      %p83 = scmp.eq.s32.totalorder %s17, 1
      %p84 = por %p82, %p83
      %p86 = scmp.ne.s32.totalorder %s71, %s85
      %p87 = scmp.eq.s32.totalorder %s17, 0
      %p88 = por %p86, %p87
      %s89 = ssub.s32 %s18, %s37
      %s90 = ssub.s32 %s19, %s33
      %s91 = sor.u32 %s89, %s90
      %p92 = scmp.eq.s32.totalorder %s91, 0
      %s94 = sadd.s32 %s93, 1
      %s95 = scalar_select %p92, %s93, %s94
      %p98 = pneg %p92
      %p99 = scmp.eq.s32.totalorder %s11, 1
      %p100 = por %p98, %p99
      %p101 = scmp.ne.s32.totalorder %s93, %s96
      %p102 = scmp.eq.s32.totalorder %s11, 0
      %p103 = por %p101, %p102
      %p104 = scmp.ne.s32.totalorder %s93, %s96
      %p105 = scmp.eq.s32.totalorder %s16, 1
      %p106 = por %p104, %p105
      %p107 = scmp.ne.s32.totalorder %s96, %s97
      %p108 = scmp.eq.s32.totalorder %s16, 0
      %p109 = por %p107, %p108
      %p110 = scmp.ne.s32.totalorder %s96, %s97
      %p111 = scmp.eq.s32.totalorder %s17, 1
      %p112 = por %p110, %p111
      %p114 = scmp.ne.s32.totalorder %s97, %s113
      %p115 = scmp.eq.s32.totalorder %s17, 0
      %p116 = por %p114, %p115
      %p117 = scmp.le.s32.totalorder 1, %s11
      %p118 = scmp.lt.s32.totalorder %s11, 3
      %p119 = pnand %p117, %p118
      %p120 = pneg %p119
      // Predicated region
      $region9: #{tpu_custom_call.1} parent=5 // pred_check
        _
      $region10: #{tpu_custom_call.1} parent=5 // pred_check_branch
        %122 = sbr.rel (%p119) target = $region12
      $region11: #{tpu_custom_call.1} parent=5 // pred_region
        %s123 = ssub.s32 %s11, 1
        // Predicated region
        $region13: #{tpu_custom_call.1} parent=11 // pred_check
          %p124 = pneg %p81
        $region14: #{tpu_custom_call.1} parent=11 // pred_check_branch
          %126 = sbr.rel (%p124) target = $region16
        $region15: #{tpu_custom_call.1} parent=11 // pred_region
          _
        $region16: #{tpu_custom_call.1} parent=11 // pred_fallthru
          _
      $region12: #{tpu_custom_call.1} parent=5 // pred_fallthru
        _
      %p127 = scmp.lt.s32.totalorder %s11, 2
      // Predicated region
      $region17: #{tpu_custom_call.1} parent=5 // pred_check
        %p128 = pneg %p127
      $region18: #{tpu_custom_call.1} parent=5 // pred_check_branch
        %130 = sbr.rel (%p128) target = $region20
      $region19: #{tpu_custom_call.1} parent=5 // pred_region
        // Predicated region
        $region21: #{tpu_custom_call.1} parent=19 // pred_check
          %p131 = pneg %p54
        $region22: #{tpu_custom_call.1} parent=19 // pred_check_branch
          %133 = sbr.rel (%p131) target = $region24
        $region23: #{tpu_custom_call.1} parent=19 // pred_region
          %s134 = sand.u32 %s44, 1
          %s135 = scalar_lea.sflag [#allocation5], %s134
          %s136 = sand.u32 %s44, 1
          %s137 = smul.addr %s136, 128
          %s138 = scalar_lea.vmem [#allocation4], %s137
          %s139 = sadd.s32 %s19, %s20
          %s140 = smul.u32 32, %s139
          %s142 = ssub.s32 2048, 2048
          %143 = vsyncadd %s135, %s142
          %s144 = smul.addr %s18, 32
          %s145 = sadd.s32 %s140, %s144
          %s146 = smul.addr %s145, 64
          %s147 = scalar_lea.hbm %s0, %s146
          %s149 = sshll.u32 %s138, 4
          %s150 = int_to_ptr.vmem [resolvable:$true] %s149
          %152 = dma.hbm_to_vmem [thread:$0]  %s147, 2048, %s150, %s135
        $region24: #{tpu_custom_call.1} parent=19 // pred_fallthru
          _
      $region20: #{tpu_custom_call.1} parent=5 // pred_fallthru
        _
      %p153 = scmp.le.s32.totalorder 1, %s11
      %p154 = scmp.lt.s32.totalorder %s11, 3
      %p155 = pnand %p153, %p154
      %p156 = pneg %p155
      // Predicated region
      $region25: #{tpu_custom_call.1} parent=5 // pred_check
        _
      $region26: #{tpu_custom_call.1} parent=5 // pred_check_branch
        %158 = sbr.rel (%p155) target = $region28
      $region27: #{tpu_custom_call.1} parent=5 // pred_region
        %s159 = ssub.s32 %s11, 1
        %s160 = sand.u32 %s47, 1
        %s161 = scalar_lea.sflag [#allocation5], %s160
        %s162 = sand.u32 %s47, 1
        %s163 = smul.addr %s162, 128
        %s164 = scalar_lea.vmem [#allocation4], %s163
        // Predicated region
        $region29: #{tpu_custom_call.1} parent=27 // pred_check
          %p165 = pneg %p60
        $region30: #{tpu_custom_call.1} parent=27 // pred_check_branch
          %167 = sbr.rel (%p165) target = $region32
        $region31: #{tpu_custom_call.1} parent=27 // pred_region
          %168 = dma.done %s161, 2048
        $region32: #{tpu_custom_call.1} parent=27 // pred_fallthru
          _
        %s169 = sand.u32 %s47, 1
        %s170 = scalar_lea.sflag [#allocation5], %s169
        %s171 = sand.u32 %s47, 1
        %s172 = smul.addr %s171, 128
        %s173 = scalar_lea.vmem [#allocation4], %s172
        %p174 = pneg %p60
        %p175 = pneg %p57
        %p176 = pneg %p81
        %p177 = pneg %p78
        %p178 = pneg %p109
        %p179 = pneg %p106
        %p180 = scmp.lt.s32.totalorder %s21, 1
        %s181 = scalar_select %p180, %s21, 1
        %p182 = scmp.lt.s32.totalorder %s22, 0
        %s183 = scalar_select %p182, %s22, 0
        %s184 = sadd.s32 %s183, %s181
        %s185 = smul.addr %s184, 8
        %s186 = scalar_lea.vmem %s2, %s185
        %s187 = sadd.s32 %s22, %s23
        %s188 = smul.u32 32, %s187
        %p189 = scmp.lt.s32.totalorder %s21, 1
        %s190 = scalar_select %p189, %s21, 1
        %p191 = scmp.lt.s32.totalorder %s22, 0
        %s192 = scalar_select %p191, %s22, 0
        %s193 = sadd.s32 %s192, %s190
        %s194 = smul.addr %s193, 8
        %s195 = scalar_lea.vmem %s2, %s194
        %p197 = scmp.eq.s32.totalorder %s23, 0
        // Predicated region
        $region33: #{tpu_custom_call.1} parent=27 // pred_check
          %p198 = pneg %p197
        $region34: #{tpu_custom_call.1} parent=27 // pred_check_branch
          %200 = sbr.rel (%p198) target = $region36
        $region35: #{tpu_custom_call.1} parent=27 // pred_region
          %vm201 = vcmask 7168
          %202 = vst.msk [vmem:[#allocation2] sm:$0xff] %vm201, 0.0
          %203 = vst.msk [vmem:[#allocation3] sm:$0xff] %vm201, 0.0
        $region36: #{tpu_custom_call.1} parent=27 // pred_fallthru
          _
        %v204 = vld [vmem:[%s164] sm:$0xff]
        %v205 = vld [vmem:[%s164 + $0x8] sm:$0xff]
        %v206 = vld [vmem:[%s164 + $0x10] sm:$0xff]
        %v207 = vld [vmem:[%s164 + $0x18] sm:$0xff]
        %v208 = vld [vmem:[%s164 + $0x20] sm:$0xff]
        %v209 = vld [vmem:[%s164 + $0x28] sm:$0xff]
        %v210 = vld [vmem:[%s164 + $0x30] sm:$0xff]
        %v211 = vld [vmem:[%s164 + $0x38] sm:$0xff]
        %v212 = vld [vmem:[%s164 + $0x40] sm:$0xff]
        %v213 = vld [vmem:[%s164 + $0x48] sm:$0xff]
        %v214 = vld [vmem:[%s164 + $0x50] sm:$0xff]
        %v215 = vld [vmem:[%s164 + $0x58] sm:$0xff]
        %v216 = vld [vmem:[%s164 + $0x60] sm:$0xff]
        %v217 = vld [vmem:[%s164 + $0x68] sm:$0xff]
        %v218 = vld [vmem:[%s164 + $0x70] sm:$0xff]
        %v219 = vld [vmem:[%s164 + $0x78] sm:$0xff]
        %v220 = vlaneseq
        %v221 = vand.u32 %v220, 127
        %v222 = vadd.s32 %v221, 128
        %v223 = vadd.s32 %v221, 256
        %v224 = vadd.s32 %v221, 384
        %v225 = vadd.s32 %v221, 512
        %v226 = vadd.s32 %v221, 640
        %v227 = vadd.s32 %v221, 768
        %v228 = vadd.s32 %v221, 896
        %v229 = vadd.s32 %v221, 1024
        %v230 = vadd.s32 %v221, 1152
        %v231 = vadd.s32 %v221, 1280
        %v232 = vadd.s32 %v221, 1408
        %v233 = vadd.s32 %v221, 1536
        %v234 = vadd.s32 %v221, 1664
        %v235 = vadd.s32 %v221, 1792
        %v236 = vadd.s32 %v221, 1920
        %v237 = vadd.s32 %v221, 2048
        %v238 = vadd.s32 %v221, 2176
        %v239 = vadd.s32 %v221, 2304
        %v240 = vadd.s32 %v221, 2432
        %v241 = vadd.s32 %v221, 2560
        %v242 = vadd.s32 %v221, 2688
        %v243 = vadd.s32 %v221, 2816
        %v244 = vadd.s32 %v221, 2944
        %v245 = vadd.s32 %v221, 3072
        %v246 = vadd.s32 %v221, 3200
        %v247 = vadd.s32 %v221, 3328
        %v248 = vadd.s32 %v221, 3456
        %v249 = vadd.s32 %v221, 3584
        %v250 = vadd.s32 %v221, 3712
        %v251 = vadd.s32 %v221, 3840
        %v252 = vadd.s32 %v221, 3968
        %s253 = sadd.s32 %s22, %s23
        %s254 = smul.u32 %s253, 4096
        %v255 = vstv %s254
        %v256 = vadd.s32 %v255, %v221
        %v257 = vadd.s32 %v255, %v222
        %v258 = vadd.s32 %v255, %v223
        %v259 = vadd.s32 %v255, %v224
        %v260 = vadd.s32 %v255, %v225
        %v261 = vadd.s32 %v255, %v226
        %v262 = vadd.s32 %v255, %v227
        %v263 = vadd.s32 %v255, %v228
        %v264 = vadd.s32 %v255, %v229
        %v265 = vadd.s32 %v255, %v230
        %v266 = vadd.s32 %v255, %v231
        %v267 = vadd.s32 %v255, %v232
        %v268 = vadd.s32 %v255, %v233
        %v269 = vadd.s32 %v255, %v234
        %v270 = vadd.s32 %v255, %v235
        %v271 = vadd.s32 %v255, %v236
        %v272 = vadd.s32 %v255, %v237
        %v273 = vadd.s32 %v255, %v238
        %v274 = vadd.s32 %v255, %v239
        %v275 = vadd.s32 %v255, %v240
        %v276 = vadd.s32 %v255, %v241
        %v277 = vadd.s32 %v255, %v242
        %v278 = vadd.s32 %v255, %v243
        %v279 = vadd.s32 %v255, %v244
        %v280 = vadd.s32 %v255, %v245
        %v281 = vadd.s32 %v255, %v246
        %v282 = vadd.s32 %v255, %v247
        %v283 = vadd.s32 %v255, %v248
        %v284 = vadd.s32 %v255, %v249
        %v285 = vadd.s32 %v255, %v250
        %v286 = vadd.s32 %v255, %v251
        %v287 = vadd.s32 %v255, %v252
        %vm288 = vcmp.lt.s32.totalorder %v256, 4096
        %vm289 = vcmp.lt.s32.totalorder %v257, 4096
        %vm290 = vcmp.lt.s32.totalorder %v258, 4096
        %vm291 = vcmp.lt.s32.totalorder %v259, 4096
        %vm292 = vcmp.lt.s32.totalorder %v260, 4096
        %vm293 = vcmp.lt.s32.totalorder %v261, 4096
        %vm294 = vcmp.lt.s32.totalorder %v262, 4096
        %vm295 = vcmp.lt.s32.totalorder %v263, 4096
        %vm296 = vcmp.lt.s32.totalorder %v264, 4096
        %vm297 = vcmp.lt.s32.totalorder %v265, 4096
        %vm298 = vcmp.lt.s32.totalorder %v266, 4096
        %vm299 = vcmp.lt.s32.totalorder %v267, 4096
        %vm300 = vcmp.lt.s32.totalorder %v268, 4096
        %vm301 = vcmp.lt.s32.totalorder %v269, 4096
        %vm302 = vcmp.lt.s32.totalorder %v270, 4096
        %vm303 = vcmp.lt.s32.totalorder %v271, 4096
        %vm304 = vcmp.lt.s32.totalorder %v272, 4096
        %vm305 = vcmp.lt.s32.totalorder %v273, 4096
        %vm306 = vcmp.lt.s32.totalorder %v274, 4096
        %vm307 = vcmp.lt.s32.totalorder %v275, 4096
        %vm308 = vcmp.lt.s32.totalorder %v276, 4096
        %vm309 = vcmp.lt.s32.totalorder %v277, 4096
        %vm310 = vcmp.lt.s32.totalorder %v278, 4096
        %vm311 = vcmp.lt.s32.totalorder %v279, 4096
        %vm312 = vcmp.lt.s32.totalorder %v280, 4096
        %vm313 = vcmp.lt.s32.totalorder %v281, 4096
        %vm314 = vcmp.lt.s32.totalorder %v282, 4096
        %vm315 = vcmp.lt.s32.totalorder %v283, 4096
        %vm316 = vcmp.lt.s32.totalorder %v284, 4096
        %vm317 = vcmp.lt.s32.totalorder %v285, 4096
        %vm318 = vcmp.lt.s32.totalorder %v286, 4096
        %vm319 = vcmp.lt.s32.totalorder %v287, 4096
        %v320 = vsel %vm288, 1, 0
        %v321 = vsel %vm289, 1, 0
        %v322 = vsel %vm290, 1, 0
        %v323 = vsel %vm291, 1, 0
        %v324 = vsel %vm292, 1, 0
        %v325 = vsel %vm293, 1, 0
        %v326 = vsel %vm294, 1, 0
        %v327 = vsel %vm295, 1, 0
        %v328 = vsel %vm296, 1, 0
        %v329 = vsel %vm297, 1, 0
        %v330 = vsel %vm298, 1, 0
        %v331 = vsel %vm299, 1, 0
        %v332 = vsel %vm300, 1, 0
        %v333 = vsel %vm301, 1, 0
        %v334 = vsel %vm302, 1, 0
        %v335 = vsel %vm303, 1, 0
        %v336 = vsel %vm304, 1, 0
        %v337 = vsel %vm305, 1, 0
        %v338 = vsel %vm306, 1, 0
        %v339 = vsel %vm307, 1, 0
        %v340 = vsel %vm308, 1, 0
        %v341 = vsel %vm309, 1, 0
        %v342 = vsel %vm310, 1, 0
        %v343 = vsel %vm311, 1, 0
        %v344 = vsel %vm312, 1, 0
        %v345 = vsel %vm313, 1, 0
        %v346 = vsel %vm314, 1, 0
        %v347 = vsel %vm315, 1, 0
        %v348 = vsel %vm316, 1, 0
        %v349 = vsel %vm317, 1, 0
        %v350 = vsel %vm318, 1, 0
        %v351 = vsel %vm319, 1, 0
        %vm352 = vcmp.eq.s32.totalorder %v320, 1
        %vm353 = vcmp.eq.s32.totalorder %v321, 1
        %vm354 = vcmp.eq.s32.totalorder %v322, 1
        %vm355 = vcmp.eq.s32.totalorder %v323, 1
        %vm356 = vcmp.eq.s32.totalorder %v324, 1
        %vm357 = vcmp.eq.s32.totalorder %v325, 1
        %vm358 = vcmp.eq.s32.totalorder %v326, 1
        %vm359 = vcmp.eq.s32.totalorder %v327, 1
        %vm360 = vcmp.eq.s32.totalorder %v328, 1
        %vm361 = vcmp.eq.s32.totalorder %v329, 1
        %vm362 = vcmp.eq.s32.totalorder %v330, 1
        %vm363 = vcmp.eq.s32.totalorder %v331, 1
        %vm364 = vcmp.eq.s32.totalorder %v332, 1
        %vm365 = vcmp.eq.s32.totalorder %v333, 1
        %vm366 = vcmp.eq.s32.totalorder %v334, 1
        %vm367 = vcmp.eq.s32.totalorder %v335, 1
        %vm368 = vcmp.eq.s32.totalorder %v336, 1
        %vm369 = vcmp.eq.s32.totalorder %v337, 1
        %vm370 = vcmp.eq.s32.totalorder %v338, 1
        %vm371 = vcmp.eq.s32.totalorder %v339, 1
        %vm372 = vcmp.eq.s32.totalorder %v340, 1
        %vm373 = vcmp.eq.s32.totalorder %v341, 1
        %vm374 = vcmp.eq.s32.totalorder %v342, 1
        %vm375 = vcmp.eq.s32.totalorder %v343, 1
        %vm376 = vcmp.eq.s32.totalorder %v344, 1
        %vm377 = vcmp.eq.s32.totalorder %v345, 1
        %vm378 = vcmp.eq.s32.totalorder %v346, 1
        %vm379 = vcmp.eq.s32.totalorder %v347, 1
        %vm380 = vcmp.eq.s32.totalorder %v348, 1
        %vm381 = vcmp.eq.s32.totalorder %v349, 1
        %vm382 = vcmp.eq.s32.totalorder %v350, 1
        %vm383 = vcmp.eq.s32.totalorder %v351, 1
        %v400 = vcombine.high %v204, %v204
        %v401 = vcombine.high %v205, %v205
        %v402 = vcombine.high %v206, %v206
        %v403 = vcombine.high %v207, %v207
        %v404 = vcombine.high %v208, %v208
        %v405 = vcombine.high %v209, %v209
        %v406 = vcombine.high %v210, %v210
        %v407 = vcombine.high %v211, %v211
        %v408 = vcombine.high %v212, %v212
        %v409 = vcombine.high %v213, %v213
        %v410 = vcombine.high %v214, %v214
        %v411 = vcombine.high %v215, %v215
        %v412 = vcombine.high %v216, %v216
        %v413 = vcombine.high %v217, %v217
        %v414 = vcombine.high %v218, %v218
        %v415 = vcombine.high %v219, %v219
        %v432 = vsel %vm352, %v204, 0.0
        %v433 = vsel %vm353, %v400, 0.0
        %v434 = vsel %vm354, %v205, 0.0
        %v435 = vsel %vm355, %v401, 0.0
        %v436 = vsel %vm356, %v206, 0.0
        %v437 = vsel %vm357, %v402, 0.0
        %v438 = vsel %vm358, %v207, 0.0
        %v439 = vsel %vm359, %v403, 0.0
        %v440 = vsel %vm360, %v208, 0.0
        %v441 = vsel %vm361, %v404, 0.0
        %v442 = vsel %vm362, %v209, 0.0
        %v443 = vsel %vm363, %v405, 0.0
        %v444 = vsel %vm364, %v210, 0.0
        %v445 = vsel %vm365, %v406, 0.0
        %v446 = vsel %vm366, %v211, 0.0
        %v447 = vsel %vm367, %v407, 0.0
        %v448 = vsel %vm368, %v212, 0.0
        %v449 = vsel %vm369, %v408, 0.0
        %v450 = vsel %vm370, %v213, 0.0
        %v451 = vsel %vm371, %v409, 0.0
        %v452 = vsel %vm372, %v214, 0.0
        %v453 = vsel %vm373, %v410, 0.0
        %v454 = vsel %vm374, %v215, 0.0
        %v455 = vsel %vm375, %v411, 0.0
        %v456 = vsel %vm376, %v216, 0.0
        %v457 = vsel %vm377, %v412, 0.0
        %v458 = vsel %vm378, %v217, 0.0
        %v459 = vsel %vm379, %v413, 0.0
        %v460 = vsel %vm380, %v218, 0.0
        %v461 = vsel %vm381, %v414, 0.0
        %v462 = vsel %vm382, %v219, 0.0
        %v463 = vsel %vm383, %v415, 0.0
        %v464 = vpack.c.bf16 %v432, %v432
        %v465 = vpack.c.bf16 %v433, %v433
        %v466 = vpack.c.bf16 %v434, %v434
        %v467 = vpack.c.bf16 %v435, %v435
        %v468 = vpack.c.bf16 %v436, %v436
        %v469 = vpack.c.bf16 %v437, %v437
        %v470 = vpack.c.bf16 %v438, %v438
        %v471 = vpack.c.bf16 %v439, %v439
        %v472 = vpack.c.bf16 %v440, %v440
        %v473 = vpack.c.bf16 %v441, %v441
        %v474 = vpack.c.bf16 %v442, %v442
        %v475 = vpack.c.bf16 %v443, %v443
        %v476 = vpack.c.bf16 %v444, %v444
        %v477 = vpack.c.bf16 %v445, %v445
        %v478 = vpack.c.bf16 %v446, %v446
        %v479 = vpack.c.bf16 %v447, %v447
        %v480 = vpack.c.bf16 %v448, %v448
        %v481 = vpack.c.bf16 %v449, %v449
        %v482 = vpack.c.bf16 %v450, %v450
        %v483 = vpack.c.bf16 %v451, %v451
        %v484 = vpack.c.bf16 %v452, %v452
        %v485 = vpack.c.bf16 %v453, %v453
        %v486 = vpack.c.bf16 %v454, %v454
        %v487 = vpack.c.bf16 %v455, %v455
        %v488 = vpack.c.bf16 %v456, %v456
        %v489 = vpack.c.bf16 %v457, %v457
        %v490 = vpack.c.bf16 %v458, %v458
        %v491 = vpack.c.bf16 %v459, %v459
        %v492 = vpack.c.bf16 %v460, %v460
        %v493 = vpack.c.bf16 %v461, %v461
        %v494 = vpack.c.bf16 %v462, %v462
        %v495 = vpack.c.bf16 %v463, %v463
        %v496 = vld [vmem:[%s1] sm:$0xf]
        %vm497 = vcmask 31744
        %v499 = vsel %vm497, %v496, 0
        %vm501 = vcmask 1041408
        %v503 = vsel %vm501, %v464, 0
        %v506 = vsel %vm501, %v465, 0
        %v509 = vsel %vm501, %v466, 0
        %v512 = vsel %vm501, %v467, 0
        %v515 = vsel %vm501, %v468, 0
        %v518 = vsel %vm501, %v469, 0
        %v521 = vsel %vm501, %v470, 0
        %v524 = vsel %vm501, %v471, 0
        %v527 = vsel %vm501, %v472, 0
        %v530 = vsel %vm501, %v473, 0
        %v533 = vsel %vm501, %v474, 0
        %v536 = vsel %vm501, %v475, 0
        %v539 = vsel %vm501, %v476, 0
        %v542 = vsel %vm501, %v477, 0
        %v545 = vsel %vm501, %v478, 0
        %v548 = vsel %vm501, %v479, 0
        %v551 = vsel %vm501, %v480, 0
        %v554 = vsel %vm501, %v481, 0
        %v557 = vsel %vm501, %v482, 0
        %v560 = vsel %vm501, %v483, 0
        %v563 = vsel %vm501, %v484, 0
        %v566 = vsel %vm501, %v485, 0
        %v569 = vsel %vm501, %v486, 0
        %v572 = vsel %vm501, %v487, 0
        %v575 = vsel %vm501, %v488, 0
        %v578 = vsel %vm501, %v489, 0
        %v581 = vsel %vm501, %v490, 0
        %v584 = vsel %vm501, %v491, 0
        %v587 = vsel %vm501, %v492, 0
        %v590 = vsel %vm501, %v493, 0
        %v593 = vsel %vm501, %v494, 0
        %v596 = vsel %vm501, %v495, 0
        %598 = vmatprep.subr.bf16.mxu0 %v506
        %599 = vmatpush1.bf16.msra.mxu0 %v503
        %600 = vmatprep.subr.bf16.mxu0 0
        %601 = vmatpush1.bf16.msra.mxu0 0
        %602 = vmatprep.subr.bf16.mxu0 0
        %603 = vmatpush1.bf16.msra.mxu0 0
        %604 = vmatprep.subr.bf16.mxu0 0
        %605 = vmatpush1.bf16.msra.mxu0 0
        %606 = vmatprep.subr.bf16.mxu0 0
        %607 = vmatpush1.bf16.msra.mxu0 0
        %608 = vmatprep.subr.bf16.mxu0 0
        %609 = vmatpush1.bf16.msra.mxu0 0
        %610 = vmatprep.subr.bf16.mxu0 0
        %611 = vmatpush1.bf16.msra.mxu0 0
        %612 = vmatprep.subr.bf16.mxu0 0
        %613 = vmatpush1.bf16.msra.mxu0 0
        %614 = vmatprep.subr.bf16.mxu0 0
        %615 = vmatpush1.bf16.msra.mxu0 0
        %616 = vmatprep.subr.bf16.mxu0 0
        %617 = vmatpush1.bf16.msra.mxu0 0
        %618 = vmatprep.subr.bf16.mxu0 0
        %619 = vmatpush1.bf16.msra.mxu0 0
        %620 = vmatprep.subr.bf16.mxu0 0
        %621 = vmatpush1.bf16.msra.mxu0 0
        %622 = vmatprep.subr.bf16.mxu0 0
        %623 = vmatpush1.bf16.msra.mxu0 0
        %624 = vmatprep.subr.bf16.mxu0 0
        %625 = vmatpush1.bf16.msra.mxu0 0
        %626 = vmatprep.subr.bf16.mxu0 0
        %627 = vmatpush1.bf16.msra.mxu0 0
        %628 = vmatprep.subr.bf16.mxu0 0
        %629 = vmatpush1.bf16.msra.mxu0 0
        %630 = vmatprep.mubr.bf16.mxu0 0
        %631 = vmatmul.mubr.bf16.gmra.mrb[0].mxu0 %v499
        %v632 = vpop.f32.mrb[0].mxu0
        %v633 = vadd.f32 0.0, %v632
        %v634 = vpop.f32.mrb[0].mxu0
        %v635 = vadd.f32 0.0, %v634
        %v636 = vpop.f32.mrb[0].mxu0
        %v637 = vpop.f32.mrb[0].mxu0
        %638 = vdwg.mxu0
        %639 = vmatprep.subr.bf16.mxu0 %v512
        %640 = vmatpush1.bf16.msra.mxu0 %v509
        %641 = vmatprep.subr.bf16.mxu0 0
        %642 = vmatpush1.bf16.msra.mxu0 0
        %643 = vmatprep.subr.bf16.mxu0 0
        %644 = vmatpush1.bf16.msra.mxu0 0
        %645 = vmatprep.subr.bf16.mxu0 0
        %646 = vmatpush1.bf16.msra.mxu0 0
        %647 = vmatprep.subr.bf16.mxu0 0
        %648 = vmatpush1.bf16.msra.mxu0 0
        %649 = vmatprep.subr.bf16.mxu0 0
        %650 = vmatpush1.bf16.msra.mxu0 0
        %651 = vmatprep.subr.bf16.mxu0 0
        %652 = vmatpush1.bf16.msra.mxu0 0
        %653 = vmatprep.subr.bf16.mxu0 0
        %654 = vmatpush1.bf16.msra.mxu0 0
        %655 = vmatprep.subr.bf16.mxu0 0
        %656 = vmatpush1.bf16.msra.mxu0 0
        %657 = vmatprep.subr.bf16.mxu0 0
        %658 = vmatpush1.bf16.msra.mxu0 0
        %659 = vmatprep.subr.bf16.mxu0 0
        %660 = vmatpush1.bf16.msra.mxu0 0
        %661 = vmatprep.subr.bf16.mxu0 0
        %662 = vmatpush1.bf16.msra.mxu0 0
        %663 = vmatprep.subr.bf16.mxu0 0
        %664 = vmatpush1.bf16.msra.mxu0 0
        %665 = vmatprep.subr.bf16.mxu0 0
        %666 = vmatpush1.bf16.msra.mxu0 0
        %667 = vmatprep.subr.bf16.mxu0 0
        %668 = vmatpush1.bf16.msra.mxu0 0
        %669 = vmatprep.subr.bf16.mxu0 0
        %670 = vmatpush1.bf16.msra.mxu0 0
        %671 = vmatprep.mubr.bf16.mxu0 0
        %672 = vmatmul.mubr.bf16.gmra.mrb[0].mxu0 %v499
        %v673 = vpop.f32.mrb[0].mxu0
        %v674 = vadd.f32 0.0, %v673
        %v675 = vpop.f32.mrb[0].mxu0
        %v676 = vadd.f32 0.0, %v675
        %v677 = vpop.f32.mrb[0].mxu0
        %v678 = vpop.f32.mrb[0].mxu0
        %679 = vdwg.mxu0
        %680 = vmatprep.subr.bf16.mxu0 %v518
        %681 = vmatpush1.bf16.msra.mxu0 %v515
        %682 = vmatprep.subr.bf16.mxu0 0
        %683 = vmatpush1.bf16.msra.mxu0 0
        %684 = vmatprep.subr.bf16.mxu0 0
        %685 = vmatpush1.bf16.msra.mxu0 0
        %686 = vmatprep.subr.bf16.mxu0 0
        %687 = vmatpush1.bf16.msra.mxu0 0
        %688 = vmatprep.subr.bf16.mxu0 0
        %689 = vmatpush1.bf16.msra.mxu0 0
        %690 = vmatprep.subr.bf16.mxu0 0
        %691 = vmatpush1.bf16.msra.mxu0 0
        %692 = vmatprep.subr.bf16.mxu0 0
        %693 = vmatpush1.bf16.msra.mxu0 0
        %694 = vmatprep.subr.bf16.mxu0 0
        %695 = vmatpush1.bf16.msra.mxu0 0
        %696 = vmatprep.subr.bf16.mxu0 0
        %697 = vmatpush1.bf16.msra.mxu0 0
        %698 = vmatprep.subr.bf16.mxu0 0
        %699 = vmatpush1.bf16.msra.mxu0 0
        %700 = vmatprep.subr.bf16.mxu0 0
        %701 = vmatpush1.bf16.msra.mxu0 0
        %702 = vmatprep.subr.bf16.mxu0 0
        %703 = vmatpush1.bf16.msra.mxu0 0
        %704 = vmatprep.subr.bf16.mxu0 0
        %705 = vmatpush1.bf16.msra.mxu0 0
        %706 = vmatprep.subr.bf16.mxu0 0
        %707 = vmatpush1.bf16.msra.mxu0 0
        %708 = vmatprep.subr.bf16.mxu0 0
        %709 = vmatpush1.bf16.msra.mxu0 0
        %710 = vmatprep.subr.bf16.mxu0 0
        %711 = vmatpush1.bf16.msra.mxu0 0
        %712 = vmatprep.mubr.bf16.mxu0 0
        %713 = vmatmul.mubr.bf16.gmra.mrb[0].mxu0 %v499
        %v714 = vpop.f32.mrb[0].mxu0
        %v715 = vadd.f32 0.0, %v714
        %v716 = vpop.f32.mrb[0].mxu0
        %v717 = vadd.f32 0.0, %v716
        %v718 = vpop.f32.mrb[0].mxu0
        %v719 = vpop.f32.mrb[0].mxu0
        %720 = vdwg.mxu0
        %721 = vmatprep.subr.bf16.mxu0 %v524
        %722 = vmatpush1.bf16.msra.mxu0 %v521
        %723 = vmatprep.subr.bf16.mxu0 0
        %724 = vmatpush1.bf16.msra.mxu0 0
        %725 = vmatprep.subr.bf16.mxu0 0
        %726 = vmatpush1.bf16.msra.mxu0 0
        %727 = vmatprep.subr.bf16.mxu0 0
        %728 = vmatpush1.bf16.msra.mxu0 0
        %729 = vmatprep.subr.bf16.mxu0 0
        %730 = vmatpush1.bf16.msra.mxu0 0
        %731 = vmatprep.subr.bf16.mxu0 0
        %732 = vmatpush1.bf16.msra.mxu0 0
        %733 = vmatprep.subr.bf16.mxu0 0
        %734 = vmatpush1.bf16.msra.mxu0 0
        %735 = vmatprep.subr.bf16.mxu0 0
        %736 = vmatpush1.bf16.msra.mxu0 0
        %737 = vmatprep.subr.bf16.mxu0 0
        %738 = vmatpush1.bf16.msra.mxu0 0
        %739 = vmatprep.subr.bf16.mxu0 0
        %740 = vmatpush1.bf16.msra.mxu0 0
        %741 = vmatprep.subr.bf16.mxu0 0
        %742 = vmatpush1.bf16.msra.mxu0 0
        %743 = vmatprep.subr.bf16.mxu0 0
        %744 = vmatpush1.bf16.msra.mxu0 0
        %745 = vmatprep.subr.bf16.mxu0 0
        %746 = vmatpush1.bf16.msra.mxu0 0
        %747 = vmatprep.subr.bf16.mxu0 0
        %748 = vmatpush1.bf16.msra.mxu0 0
        %749 = vmatprep.subr.bf16.mxu0 0
        %750 = vmatpush1.bf16.msra.mxu0 0
        %751 = vmatprep.subr.bf16.mxu0 0
        %752 = vmatpush1.bf16.msra.mxu0 0
        %753 = vmatprep.mubr.bf16.mxu0 0
        %754 = vmatmul.mubr.bf16.gmra.mrb[0].mxu0 %v499
        %v755 = vpop.f32.mrb[0].mxu0
        %v756 = vadd.f32 0.0, %v755
        %v757 = vpop.f32.mrb[0].mxu0
        %v758 = vadd.f32 0.0, %v757
        %v759 = vpop.f32.mrb[0].mxu0
        %v760 = vpop.f32.mrb[0].mxu0
        %761 = vdwg.mxu0
        %762 = vmatprep.subr.bf16.mxu0 %v530
        %763 = vmatpush1.bf16.msra.mxu0 %v527
        %764 = vmatprep.subr.bf16.mxu0 0
        %765 = vmatpush1.bf16.msra.mxu0 0
        %766 = vmatprep.subr.bf16.mxu0 0
        %767 = vmatpush1.bf16.msra.mxu0 0
        %768 = vmatprep.subr.bf16.mxu0 0
        %769 = vmatpush1.bf16.msra.mxu0 0
        %770 = vmatprep.subr.bf16.mxu0 0
        %771 = vmatpush1.bf16.msra.mxu0 0
        %772 = vmatprep.subr.bf16.mxu0 0
        %773 = vmatpush1.bf16.msra.mxu0 0
        %774 = vmatprep.subr.bf16.mxu0 0
        %775 = vmatpush1.bf16.msra.mxu0 0
        %776 = vmatprep.subr.bf16.mxu0 0
        %777 = vmatpush1.bf16.msra.mxu0 0
        %778 = vmatprep.subr.bf16.mxu0 0
        %779 = vmatpush1.bf16.msra.mxu0 0
        %780 = vmatprep.subr.bf16.mxu0 0
        %781 = vmatpush1.bf16.msra.mxu0 0
        %782 = vmatprep.subr.bf16.mxu0 0
        %783 = vmatpush1.bf16.msra.mxu0 0
        %784 = vmatprep.subr.bf16.mxu0 0
        %785 = vmatpush1.bf16.msra.mxu0 0
        %786 = vmatprep.subr.bf16.mxu0 0
        %787 = vmatpush1.bf16.msra.mxu0 0
        %788 = vmatprep.subr.bf16.mxu0 0
        %789 = vmatpush1.bf16.msra.mxu0 0
        %790 = vmatprep.subr.bf16.mxu0 0
        %791 = vmatpush1.bf16.msra.mxu0 0
        %792 = vmatprep.subr.bf16.mxu0 0
        %793 = vmatpush1.bf16.msra.mxu0 0
        %794 = vmatprep.mubr.bf16.mxu0 0
        %795 = vmatmul.mubr.bf16.gmra.mrb[0].mxu0 %v499
        %v796 = vpop.f32.mrb[0].mxu0
        %v797 = vadd.f32 0.0, %v796
        %v798 = vpop.f32.mrb[0].mxu0
        %v799 = vadd.f32 0.0, %v798
        %v800 = vpop.f32.mrb[0].mxu0
        %v801 = vpop.f32.mrb[0].mxu0
        %802 = vdwg.mxu0
        %803 = vmatprep.subr.bf16.mxu0 %v536
        %804 = vmatpush1.bf16.msra.mxu0 %v533
        %805 = vmatprep.subr.bf16.mxu0 0
        %806 = vmatpush1.bf16.msra.mxu0 0
        %807 = vmatprep.subr.bf16.mxu0 0
        %808 = vmatpush1.bf16.msra.mxu0 0
        %809 = vmatprep.subr.bf16.mxu0 0
        %810 = vmatpush1.bf16.msra.mxu0 0
        %811 = vmatprep.subr.bf16.mxu0 0
        %812 = vmatpush1.bf16.msra.mxu0 0
        %813 = vmatprep.subr.bf16.mxu0 0
        %814 = vmatpush1.bf16.msra.mxu0 0
        %815 = vmatprep.subr.bf16.mxu0 0
        %816 = vmatpush1.bf16.msra.mxu0 0
        %817 = vmatprep.subr.bf16.mxu0 0
        %818 = vmatpush1.bf16.msra.mxu0 0
        %819 = vmatprep.subr.bf16.mxu0 0
        %820 = vmatpush1.bf16.msra.mxu0 0
        %821 = vmatprep.subr.bf16.mxu0 0
        %822 = vmatpush1.bf16.msra.mxu0 0
        %823 = vmatprep.subr.bf16.mxu0 0
        %824 = vmatpush1.bf16.msra.mxu0 0
        %825 = vmatprep.subr.bf16.mxu0 0
        %826 = vmatpush1.bf16.msra.mxu0 0
        %827 = vmatprep.subr.bf16.mxu0 0
        %828 = vmatpush1.bf16.msra.mxu0 0
        %829 = vmatprep.subr.bf16.mxu0 0
        %830 = vmatpush1.bf16.msra.mxu0 0
        %831 = vmatprep.subr.bf16.mxu0 0
        %832 = vmatpush1.bf16.msra.mxu0 0
        %833 = vmatprep.subr.bf16.mxu0 0
        %834 = vmatpush1.bf16.msra.mxu0 0
        %835 = vmatprep.mubr.bf16.mxu0 0
        %836 = vmatmul.mubr.bf16.gmra.mrb[0].mxu0 %v499
        %v837 = vpop.f32.mrb[0].mxu0
        %v838 = vadd.f32 0.0, %v837
        %v839 = vpop.f32.mrb[0].mxu0
        %v840 = vadd.f32 0.0, %v839
        %v841 = vpop.f32.mrb[0].mxu0
        %v842 = vpop.f32.mrb[0].mxu0
        %843 = vdwg.mxu0
        %844 = vmatprep.subr.bf16.mxu0 %v542
        %845 = vmatpush1.bf16.msra.mxu0 %v539
        %846 = vmatprep.subr.bf16.mxu0 0
        %847 = vmatpush1.bf16.msra.mxu0 0
        %848 = vmatprep.subr.bf16.mxu0 0
        %849 = vmatpush1.bf16.msra.mxu0 0
        %850 = vmatprep.subr.bf16.mxu0 0
        %851 = vmatpush1.bf16.msra.mxu0 0
        %852 = vmatprep.subr.bf16.mxu0 0
        %853 = vmatpush1.bf16.msra.mxu0 0
        %854 = vmatprep.subr.bf16.mxu0 0
        %855 = vmatpush1.bf16.msra.mxu0 0
        %856 = vmatprep.subr.bf16.mxu0 0
        %857 = vmatpush1.bf16.msra.mxu0 0
        %858 = vmatprep.subr.bf16.mxu0 0
        %859 = vmatpush1.bf16.msra.mxu0 0
        %860 = vmatprep.subr.bf16.mxu0 0
        %861 = vmatpush1.bf16.msra.mxu0 0
        %862 = vmatprep.subr.bf16.mxu0 0
        %863 = vmatpush1.bf16.msra.mxu0 0
        %864 = vmatprep.subr.bf16.mxu0 0
        %865 = vmatpush1.bf16.msra.mxu0 0
        %866 = vmatprep.subr.bf16.mxu0 0
        %867 = vmatpush1.bf16.msra.mxu0 0
        %868 = vmatprep.subr.bf16.mxu0 0
        %869 = vmatpush1.bf16.msra.mxu0 0
        %870 = vmatprep.subr.bf16.mxu0 0
        %871 = vmatpush1.bf16.msra.mxu0 0
        %872 = vmatprep.subr.bf16.mxu0 0
        %873 = vmatpush1.bf16.msra.mxu0 0
        %874 = vmatprep.subr.bf16.mxu0 0
        %875 = vmatpush1.bf16.msra.mxu0 0
        %876 = vmatprep.mubr.bf16.mxu0 0
        %877 = vmatmul.mubr.bf16.gmra.mrb[0].mxu0 %v499
        %v878 = vpop.f32.mrb[0].mxu0
        %v879 = vadd.f32 0.0, %v878
        %v880 = vpop.f32.mrb[0].mxu0
        %v881 = vadd.f32 0.0, %v880
        %v882 = vpop.f32.mrb[0].mxu0
        %v883 = vpop.f32.mrb[0].mxu0
        %884 = vdwg.mxu0
        %885 = vmatprep.subr.bf16.mxu0 %v548
        %886 = vmatpush1.bf16.msra.mxu0 %v545
        %887 = vmatprep.subr.bf16.mxu0 0
        %888 = vmatpush1.bf16.msra.mxu0 0
        %889 = vmatprep.subr.bf16.mxu0 0
        %890 = vmatpush1.bf16.msra.mxu0 0
        %891 = vmatprep.subr.bf16.mxu0 0
        %892 = vmatpush1.bf16.msra.mxu0 0
        %893 = vmatprep.subr.bf16.mxu0 0
        %894 = vmatpush1.bf16.msra.mxu0 0
        %895 = vmatprep.subr.bf16.mxu0 0
        %896 = vmatpush1.bf16.msra.mxu0 0
        %897 = vmatprep.subr.bf16.mxu0 0
        %898 = vmatpush1.bf16.msra.mxu0 0
        %899 = vmatprep.subr.bf16.mxu0 0
        %900 = vmatpush1.bf16.msra.mxu0 0
        %901 = vmatprep.subr.bf16.mxu0 0
        %902 = vmatpush1.bf16.msra.mxu0 0
        %903 = vmatprep.subr.bf16.mxu0 0
        %904 = vmatpush1.bf16.msra.mxu0 0
        %905 = vmatprep.subr.bf16.mxu0 0
        %906 = vmatpush1.bf16.msra.mxu0 0
        %907 = vmatprep.subr.bf16.mxu0 0
        %908 = vmatpush1.bf16.msra.mxu0 0
        %909 = vmatprep.subr.bf16.mxu0 0
        %910 = vmatpush1.bf16.msra.mxu0 0
        %911 = vmatprep.subr.bf16.mxu0 0
        %912 = vmatpush1.bf16.msra.mxu0 0
        %913 = vmatprep.subr.bf16.mxu0 0
        %914 = vmatpush1.bf16.msra.mxu0 0
        %915 = vmatprep.subr.bf16.mxu0 0
        %916 = vmatpush1.bf16.msra.mxu0 0
        %917 = vmatprep.mubr.bf16.mxu0 0
        %918 = vmatmul.mubr.bf16.gmra.mrb[0].mxu0 %v499
        %v919 = vpop.f32.mrb[0].mxu0
        %v920 = vadd.f32 0.0, %v919
        %v921 = vpop.f32.mrb[0].mxu0
        %v922 = vadd.f32 0.0, %v921
        %v923 = vpop.f32.mrb[0].mxu0
        %v924 = vpop.f32.mrb[0].mxu0
        %925 = vdwg.mxu0
        %926 = vmatprep.subr.bf16.mxu0 %v554
        %927 = vmatpush1.bf16.msra.mxu0 %v551
        %928 = vmatprep.subr.bf16.mxu0 0
        %929 = vmatpush1.bf16.msra.mxu0 0
        %930 = vmatprep.subr.bf16.mxu0 0
        %931 = vmatpush1.bf16.msra.mxu0 0
        %932 = vmatprep.subr.bf16.mxu0 0
        %933 = vmatpush1.bf16.msra.mxu0 0
        %934 = vmatprep.subr.bf16.mxu0 0
        %935 = vmatpush1.bf16.msra.mxu0 0
        %936 = vmatprep.subr.bf16.mxu0 0
        %937 = vmatpush1.bf16.msra.mxu0 0
        %938 = vmatprep.subr.bf16.mxu0 0
        %939 = vmatpush1.bf16.msra.mxu0 0
        %940 = vmatprep.subr.bf16.mxu0 0
        %941 = vmatpush1.bf16.msra.mxu0 0
        %942 = vmatprep.subr.bf16.mxu0 0
        %943 = vmatpush1.bf16.msra.mxu0 0
        %944 = vmatprep.subr.bf16.mxu0 0
        %945 = vmatpush1.bf16.msra.mxu0 0
        %946 = vmatprep.subr.bf16.mxu0 0
        %947 = vmatpush1.bf16.msra.mxu0 0
        %948 = vmatprep.subr.bf16.mxu0 0
        %949 = vmatpush1.bf16.msra.mxu0 0
        %950 = vmatprep.subr.bf16.mxu0 0
        %951 = vmatpush1.bf16.msra.mxu0 0
        %952 = vmatprep.subr.bf16.mxu0 0
        %953 = vmatpush1.bf16.msra.mxu0 0
        %954 = vmatprep.subr.bf16.mxu0 0
        %955 = vmatpush1.bf16.msra.mxu0 0
        %956 = vmatprep.subr.bf16.mxu0 0
        %957 = vmatpush1.bf16.msra.mxu0 0
        %958 = vmatprep.mubr.bf16.mxu0 0
        %959 = vmatmul.mubr.bf16.gmra.mrb[0].mxu0 %v499
        %v960 = vpop.f32.mrb[0].mxu0
        %v961 = vadd.f32 0.0, %v960
        %v962 = vpop.f32.mrb[0].mxu0
        %v963 = vadd.f32 0.0, %v962
        %v964 = vpop.f32.mrb[0].mxu0
        %v965 = vpop.f32.mrb[0].mxu0
        %966 = vdwg.mxu0
        %967 = vmatprep.subr.bf16.mxu0 %v560
        %968 = vmatpush1.bf16.msra.mxu0 %v557
        %969 = vmatprep.subr.bf16.mxu0 0
        %970 = vmatpush1.bf16.msra.mxu0 0
        %971 = vmatprep.subr.bf16.mxu0 0
        %972 = vmatpush1.bf16.msra.mxu0 0
        %973 = vmatprep.subr.bf16.mxu0 0
        %974 = vmatpush1.bf16.msra.mxu0 0
        %975 = vmatprep.subr.bf16.mxu0 0
        %976 = vmatpush1.bf16.msra.mxu0 0
        %977 = vmatprep.subr.bf16.mxu0 0
        %978 = vmatpush1.bf16.msra.mxu0 0
        %979 = vmatprep.subr.bf16.mxu0 0
        %980 = vmatpush1.bf16.msra.mxu0 0
        %981 = vmatprep.subr.bf16.mxu0 0
        %982 = vmatpush1.bf16.msra.mxu0 0
        %983 = vmatprep.subr.bf16.mxu0 0
        %984 = vmatpush1.bf16.msra.mxu0 0
        %985 = vmatprep.subr.bf16.mxu0 0
        %986 = vmatpush1.bf16.msra.mxu0 0
        %987 = vmatprep.subr.bf16.mxu0 0
        %988 = vmatpush1.bf16.msra.mxu0 0
        %989 = vmatprep.subr.bf16.mxu0 0
        %990 = vmatpush1.bf16.msra.mxu0 0
        %991 = vmatprep.subr.bf16.mxu0 0
        %992 = vmatpush1.bf16.msra.mxu0 0
        %993 = vmatprep.subr.bf16.mxu0 0
        %994 = vmatpush1.bf16.msra.mxu0 0
        %995 = vmatprep.subr.bf16.mxu0 0
        %996 = vmatpush1.bf16.msra.mxu0 0
        %997 = vmatprep.subr.bf16.mxu0 0
        %998 = vmatpush1.bf16.msra.mxu0 0
        %999 = vmatprep.mubr.bf16.mxu0 0
        %1000 = vmatmul.mubr.bf16.gmra.mrb[0].mxu0 %v499
        %v1001 = vpop.f32.mrb[0].mxu0
        %v1002 = vadd.f32 0.0, %v1001
        %v1003 = vpop.f32.mrb[0].mxu0
        %v1004 = vadd.f32 0.0, %v1003
        %v1005 = vpop.f32.mrb[0].mxu0
        %v1006 = vpop.f32.mrb[0].mxu0
        %1007 = vdwg.mxu0
        %1008 = vmatprep.subr.bf16.mxu0 %v566
        %1009 = vmatpush1.bf16.msra.mxu0 %v563
        %1010 = vmatprep.subr.bf16.mxu0 0
        %1011 = vmatpush1.bf16.msra.mxu0 0
        %1012 = vmatprep.subr.bf16.mxu0 0
        %1013 = vmatpush1.bf16.msra.mxu0 0
        %1014 = vmatprep.subr.bf16.mxu0 0
        %1015 = vmatpush1.bf16.msra.mxu0 0
        %1016 = vmatprep.subr.bf16.mxu0 0
        %1017 = vmatpush1.bf16.msra.mxu0 0
        %1018 = vmatprep.subr.bf16.mxu0 0
        %1019 = vmatpush1.bf16.msra.mxu0 0
        %1020 = vmatprep.subr.bf16.mxu0 0
        %1021 = vmatpush1.bf16.msra.mxu0 0
        %1022 = vmatprep.subr.bf16.mxu0 0
        %1023 = vmatpush1.bf16.msra.mxu0 0
        %1024 = vmatprep.subr.bf16.mxu0 0
        %1025 = vmatpush1.bf16.msra.mxu0 0
        %1026 = vmatprep.subr.bf16.mxu0 0
        %1027 = vmatpush1.bf16.msra.mxu0 0
        %1028 = vmatprep.subr.bf16.mxu0 0
        %1029 = vmatpush1.bf16.msra.mxu0 0
        %1030 = vmatprep.subr.bf16.mxu0 0
        %1031 = vmatpush1.bf16.msra.mxu0 0
        %1032 = vmatprep.subr.bf16.mxu0 0
        %1033 = vmatpush1.bf16.msra.mxu0 0
        %1034 = vmatprep.subr.bf16.mxu0 0
        %1035 = vmatpush1.bf16.msra.mxu0 0
        %1036 = vmatprep.subr.bf16.mxu0 0
        %1037 = vmatpush1.bf16.msra.mxu0 0
        %1038 = vmatprep.subr.bf16.mxu0 0
        %1039 = vmatpush1.bf16.msra.mxu0 0
        %1040 = vmatprep.mubr.bf16.mxu0 0
        %1041 = vmatmul.mubr.bf16.gmra.mrb[0].mxu0 %v499
        %v1042 = vpop.f32.mrb[0].mxu0
        %v1043 = vadd.f32 0.0, %v1042
        %v1044 = vpop.f32.mrb[0].mxu0
        %v1045 = vadd.f32 0.0, %v1044
        %v1046 = vpop.f32.mrb[0].mxu0
        %v1047 = vpop.f32.mrb[0].mxu0
        %1048 = vdwg.mxu0
        %1049 = vmatprep.subr.bf16.mxu0 %v572
        %1050 = vmatpush1.bf16.msra.mxu0 %v569
        %1051 = vmatprep.subr.bf16.mxu0 0
        %1052 = vmatpush1.bf16.msra.mxu0 0
        %1053 = vmatprep.subr.bf16.mxu0 0
        %1054 = vmatpush1.bf16.msra.mxu0 0
        %1055 = vmatprep.subr.bf16.mxu0 0
        %1056 = vmatpush1.bf16.msra.mxu0 0
        %1057 = vmatprep.subr.bf16.mxu0 0
        %1058 = vmatpush1.bf16.msra.mxu0 0
        %1059 = vmatprep.subr.bf16.mxu0 0
        %1060 = vmatpush1.bf16.msra.mxu0 0
        %1061 = vmatprep.subr.bf16.mxu0 0
        %1062 = vmatpush1.bf16.msra.mxu0 0
        %1063 = vmatprep.subr.bf16.mxu0 0
        %1064 = vmatpush1.bf16.msra.mxu0 0
        %1065 = vmatprep.subr.bf16.mxu0 0
        %1066 = vmatpush1.bf16.msra.mxu0 0
        %1067 = vmatprep.subr.bf16.mxu0 0
        %1068 = vmatpush1.bf16.msra.mxu0 0
        %1069 = vmatprep.subr.bf16.mxu0 0
        %1070 = vmatpush1.bf16.msra.mxu0 0
        %1071 = vmatprep.subr.bf16.mxu0 0
        %1072 = vmatpush1.bf16.msra.mxu0 0
        %1073 = vmatprep.subr.bf16.mxu0 0
        %1074 = vmatpush1.bf16.msra.mxu0 0
        %1075 = vmatprep.subr.bf16.mxu0 0
        %1076 = vmatpush1.bf16.msra.mxu0 0
        %1077 = vmatprep.subr.bf16.mxu0 0
        %1078 = vmatpush1.bf16.msra.mxu0 0
        %1079 = vmatprep.subr.bf16.mxu0 0
        %1080 = vmatpush1.bf16.msra.mxu0 0
        %1081 = vmatprep.mubr.bf16.mxu0 0
        %1082 = vmatmul.mubr.bf16.gmra.mrb[0].mxu0 %v499
        %v1083 = vpop.f32.mrb[0].mxu0
        %v1084 = vadd.f32 0.0, %v1083
        %v1085 = vpop.f32.mrb[0].mxu0
        %v1086 = vadd.f32 0.0, %v1085
        %v1087 = vpop.f32.mrb[0].mxu0
        %v1088 = vpop.f32.mrb[0].mxu0
        %1089 = vdwg.mxu0
        %1090 = vmatprep.subr.bf16.mxu0 %v578
        %1091 = vmatpush1.bf16.msra.mxu0 %v575
        %1092 = vmatprep.subr.bf16.mxu0 0
        %1093 = vmatpush1.bf16.msra.mxu0 0
        %1094 = vmatprep.subr.bf16.mxu0 0
        %1095 = vmatpush1.bf16.msra.mxu0 0
        %1096 = vmatprep.subr.bf16.mxu0 0
        %1097 = vmatpush1.bf16.msra.mxu0 0
        %1098 = vmatprep.subr.bf16.mxu0 0
        %1099 = vmatpush1.bf16.msra.mxu0 0
        %1100 = vmatprep.subr.bf16.mxu0 0
        %1101 = vmatpush1.bf16.msra.mxu0 0
        %1102 = vmatprep.subr.bf16.mxu0 0
        %1103 = vmatpush1.bf16.msra.mxu0 0
        %1104 = vmatprep.subr.bf16.mxu0 0
        %1105 = vmatpush1.bf16.msra.mxu0 0
        %1106 = vmatprep.subr.bf16.mxu0 0
        %1107 = vmatpush1.bf16.msra.mxu0 0
        %1108 = vmatprep.subr.bf16.mxu0 0
        %1109 = vmatpush1.bf16.msra.mxu0 0
        %1110 = vmatprep.subr.bf16.mxu0 0
        %1111 = vmatpush1.bf16.msra.mxu0 0
        %1112 = vmatprep.subr.bf16.mxu0 0
        %1113 = vmatpush1.bf16.msra.mxu0 0
        %1114 = vmatprep.subr.bf16.mxu0 0
        %1115 = vmatpush1.bf16.msra.mxu0 0
        %1116 = vmatprep.subr.bf16.mxu0 0
        %1117 = vmatpush1.bf16.msra.mxu0 0
        %1118 = vmatprep.subr.bf16.mxu0 0
        %1119 = vmatpush1.bf16.msra.mxu0 0
        %1120 = vmatprep.subr.bf16.mxu0 0
        %1121 = vmatpush1.bf16.msra.mxu0 0
        %1122 = vmatprep.mubr.bf16.mxu0 0
        %1123 = vmatmul.mubr.bf16.gmra.mrb[0].mxu0 %v499
        %v1124 = vpop.f32.mrb[0].mxu0
        %v1125 = vadd.f32 0.0, %v1124
        %v1126 = vpop.f32.mrb[0].mxu0
        %v1127 = vadd.f32 0.0, %v1126
        %v1128 = vpop.f32.mrb[0].mxu0
        %v1129 = vpop.f32.mrb[0].mxu0
        %1130 = vdwg.mxu0
        %1131 = vmatprep.subr.bf16.mxu0 %v584
        %1132 = vmatpush1.bf16.msra.mxu0 %v581
        %1133 = vmatprep.subr.bf16.mxu0 0
        %1134 = vmatpush1.bf16.msra.mxu0 0
        %1135 = vmatprep.subr.bf16.mxu0 0
        %1136 = vmatpush1.bf16.msra.mxu0 0
        %1137 = vmatprep.subr.bf16.mxu0 0
        %1138 = vmatpush1.bf16.msra.mxu0 0
        %1139 = vmatprep.subr.bf16.mxu0 0
        %1140 = vmatpush1.bf16.msra.mxu0 0
        %1141 = vmatprep.subr.bf16.mxu0 0
        %1142 = vmatpush1.bf16.msra.mxu0 0
        %1143 = vmatprep.subr.bf16.mxu0 0
        %1144 = vmatpush1.bf16.msra.mxu0 0
        %1145 = vmatprep.subr.bf16.mxu0 0
        %1146 = vmatpush1.bf16.msra.mxu0 0
        %1147 = vmatprep.subr.bf16.mxu0 0
        %1148 = vmatpush1.bf16.msra.mxu0 0
        %1149 = vmatprep.subr.bf16.mxu0 0
        %1150 = vmatpush1.bf16.msra.mxu0 0
        %1151 = vmatprep.subr.bf16.mxu0 0
        %1152 = vmatpush1.bf16.msra.mxu0 0
        %1153 = vmatprep.subr.bf16.mxu0 0
        %1154 = vmatpush1.bf16.msra.mxu0 0
        %1155 = vmatprep.subr.bf16.mxu0 0
        %1156 = vmatpush1.bf16.msra.mxu0 0
        %1157 = vmatprep.subr.bf16.mxu0 0
        %1158 = vmatpush1.bf16.msra.mxu0 0
        %1159 = vmatprep.subr.bf16.mxu0 0
        %1160 = vmatpush1.bf16.msra.mxu0 0
        %1161 = vmatprep.subr.bf16.mxu0 0
        %1162 = vmatpush1.bf16.msra.mxu0 0
        %1163 = vmatprep.mubr.bf16.mxu0 0
        %1164 = vmatmul.mubr.bf16.gmra.mrb[0].mxu0 %v499
        %v1165 = vpop.f32.mrb[0].mxu0
        %v1166 = vadd.f32 0.0, %v1165
        %v1167 = vpop.f32.mrb[0].mxu0
        %v1168 = vadd.f32 0.0, %v1167
        %v1169 = vpop.f32.mrb[0].mxu0
        %v1170 = vpop.f32.mrb[0].mxu0
        %1171 = vdwg.mxu0
        %1172 = vmatprep.subr.bf16.mxu0 %v590
        %1173 = vmatpush1.bf16.msra.mxu0 %v587
        %1174 = vmatprep.subr.bf16.mxu0 0
        %1175 = vmatpush1.bf16.msra.mxu0 0
        %1176 = vmatprep.subr.bf16.mxu0 0
        %1177 = vmatpush1.bf16.msra.mxu0 0
        %1178 = vmatprep.subr.bf16.mxu0 0
        %1179 = vmatpush1.bf16.msra.mxu0 0
        %1180 = vmatprep.subr.bf16.mxu0 0
        %1181 = vmatpush1.bf16.msra.mxu0 0
        %1182 = vmatprep.subr.bf16.mxu0 0
        %1183 = vmatpush1.bf16.msra.mxu0 0
        %1184 = vmatprep.subr.bf16.mxu0 0
        %1185 = vmatpush1.bf16.msra.mxu0 0
        %1186 = vmatprep.subr.bf16.mxu0 0
        %1187 = vmatpush1.bf16.msra.mxu0 0
        %1188 = vmatprep.subr.bf16.mxu0 0
        %1189 = vmatpush1.bf16.msra.mxu0 0
        %1190 = vmatprep.subr.bf16.mxu0 0
        %1191 = vmatpush1.bf16.msra.mxu0 0
        %1192 = vmatprep.subr.bf16.mxu0 0
        %1193 = vmatpush1.bf16.msra.mxu0 0
        %1194 = vmatprep.subr.bf16.mxu0 0
        %1195 = vmatpush1.bf16.msra.mxu0 0
        %1196 = vmatprep.subr.bf16.mxu0 0
        %1197 = vmatpush1.bf16.msra.mxu0 0
        %1198 = vmatprep.subr.bf16.mxu0 0
        %1199 = vmatpush1.bf16.msra.mxu0 0
        %1200 = vmatprep.subr.bf16.mxu0 0
        %1201 = vmatpush1.bf16.msra.mxu0 0
        %1202 = vmatprep.subr.bf16.mxu0 0
        %1203 = vmatpush1.bf16.msra.mxu0 0
        %1204 = vmatprep.mubr.bf16.mxu0 0
        %1205 = vmatmul.mubr.bf16.gmra.mrb[0].mxu0 %v499
        %v1206 = vpop.f32.mrb[0].mxu0
        %v1207 = vadd.f32 0.0, %v1206
        %v1208 = vpop.f32.mrb[0].mxu0
        %v1209 = vadd.f32 0.0, %v1208
        %v1210 = vpop.f32.mrb[0].mxu0
        %v1211 = vpop.f32.mrb[0].mxu0
        %1212 = vdwg.mxu0
        %1213 = vmatprep.subr.bf16.mxu0 %v596
        %1214 = vmatpush1.bf16.msra.mxu0 %v593
        %1215 = vmatprep.subr.bf16.mxu0 0
        %1216 = vmatpush1.bf16.msra.mxu0 0
        %1217 = vmatprep.subr.bf16.mxu0 0
        %1218 = vmatpush1.bf16.msra.mxu0 0
        %1219 = vmatprep.subr.bf16.mxu0 0
        %1220 = vmatpush1.bf16.msra.mxu0 0
        %1221 = vmatprep.subr.bf16.mxu0 0
        %1222 = vmatpush1.bf16.msra.mxu0 0
        %1223 = vmatprep.subr.bf16.mxu0 0
        %1224 = vmatpush1.bf16.msra.mxu0 0
        %1225 = vmatprep.subr.bf16.mxu0 0
        %1226 = vmatpush1.bf16.msra.mxu0 0
        %1227 = vmatprep.subr.bf16.mxu0 0
        %1228 = vmatpush1.bf16.msra.mxu0 0
        %1229 = vmatprep.subr.bf16.mxu0 0
        %1230 = vmatpush1.bf16.msra.mxu0 0
        %1231 = vmatprep.subr.bf16.mxu0 0
        %1232 = vmatpush1.bf16.msra.mxu0 0
        %1233 = vmatprep.subr.bf16.mxu0 0
        %1234 = vmatpush1.bf16.msra.mxu0 0
        %1235 = vmatprep.subr.bf16.mxu0 0
        %1236 = vmatpush1.bf16.msra.mxu0 0
        %1237 = vmatprep.subr.bf16.mxu0 0
        %1238 = vmatpush1.bf16.msra.mxu0 0
        %1239 = vmatprep.subr.bf16.mxu0 0
        %1240 = vmatpush1.bf16.msra.mxu0 0
        %1241 = vmatprep.subr.bf16.mxu0 0
        %1242 = vmatpush1.bf16.msra.mxu0 0
        %1243 = vmatprep.subr.bf16.mxu0 0
        %1244 = vmatpush1.bf16.msra.mxu0 0
        %1245 = vmatprep.mubr.bf16.mxu0 0
        %1246 = vmatmul.mubr.bf16.gmra.mrb[0].mxu0 %v499
        %v1247 = vpop.f32.mrb[0].mxu0
        %v1248 = vadd.f32 0.0, %v1247
        %v1249 = vpop.f32.mrb[0].mxu0
        %v1250 = vadd.f32 0.0, %v1249
        %v1251 = vpop.f32.mrb[0].mxu0
        %v1252 = vpop.f32.mrb[0].mxu0
        %1253 = vdwg.mxu0
        %v1254 = vld [vmem:[#allocation2] sm:$0xff]
        %v1255 = vadd.f32 %v633, %v635
        %v1256 = vadd.f32 %v1255, %v674
        %v1257 = vadd.f32 %v1256, %v676
        %v1258 = vadd.f32 %v1257, %v715
        %v1259 = vadd.f32 %v1258, %v717
        %v1260 = vadd.f32 %v1259, %v756
        %v1261 = vadd.f32 %v1260, %v758
        %v1262 = vadd.f32 %v1261, %v797
        %v1263 = vadd.f32 %v1262, %v799
        %v1264 = vadd.f32 %v1263, %v838
        %v1265 = vadd.f32 %v1264, %v840
        %v1266 = vadd.f32 %v1265, %v879
        %v1267 = vadd.f32 %v1266, %v881
        %v1268 = vadd.f32 %v1267, %v920
        %v1269 = vadd.f32 %v1268, %v922
        %v1270 = vadd.f32 %v1269, %v961
        %v1271 = vadd.f32 %v1270, %v963
        %v1272 = vadd.f32 %v1271, %v1002
        %v1273 = vadd.f32 %v1272, %v1004
        %v1274 = vadd.f32 %v1273, %v1043
        %v1275 = vadd.f32 %v1274, %v1045
        %v1276 = vadd.f32 %v1275, %v1084
        %v1277 = vadd.f32 %v1276, %v1086
        %v1278 = vadd.f32 %v1277, %v1125
        %v1279 = vadd.f32 %v1278, %v1127
        %v1280 = vadd.f32 %v1279, %v1166
        %v1281 = vadd.f32 %v1280, %v1168
        %v1282 = vadd.f32 %v1281, %v1207
        %v1283 = vadd.f32 %v1282, %v1209
        %v1284 = vadd.f32 %v1283, %v1248
        %v1285 = vadd.f32 %v1284, %v1250
        %1286 = vadd.xlane.f32.xlu0 %v1285
        %v1287 = vpop.xlane.xlu0 %1286
        %v1288 = vadd.f32 %v1254, %v1287
        %vm1289 = vcmask 7168
        %1290 = vst.msk [vmem:[#allocation2] sm:$0xff] %vm1289, %v1288
        %v1291 = vld [vmem:[#allocation3] sm:$0xff]
        %v1292 = vmul.f32 %v633, %v633
        %v1293 = vmul.f32 %v635, %v635
        %v1294 = vmul.f32 %v674, %v674
        %v1295 = vmul.f32 %v676, %v676
        %v1296 = vmul.f32 %v715, %v715
        %v1297 = vmul.f32 %v717, %v717
        %v1298 = vmul.f32 %v756, %v756
        %v1299 = vmul.f32 %v758, %v758
        %v1300 = vmul.f32 %v797, %v797
        %v1301 = vmul.f32 %v799, %v799
        %v1302 = vmul.f32 %v838, %v838
        %v1303 = vmul.f32 %v840, %v840
        %v1304 = vmul.f32 %v879, %v879
        %v1305 = vmul.f32 %v881, %v881
        %v1306 = vmul.f32 %v920, %v920
        %v1307 = vmul.f32 %v922, %v922
        %v1308 = vmul.f32 %v961, %v961
        %v1309 = vmul.f32 %v963, %v963
        %v1310 = vmul.f32 %v1002, %v1002
        %v1311 = vmul.f32 %v1004, %v1004
        %v1312 = vmul.f32 %v1043, %v1043
        %v1313 = vmul.f32 %v1045, %v1045
        %v1314 = vmul.f32 %v1084, %v1084
        %v1315 = vmul.f32 %v1086, %v1086
        %v1316 = vmul.f32 %v1125, %v1125
        %v1317 = vmul.f32 %v1127, %v1127
        %v1318 = vmul.f32 %v1166, %v1166
        %v1319 = vmul.f32 %v1168, %v1168
        %v1320 = vmul.f32 %v1207, %v1207
        %v1321 = vmul.f32 %v1209, %v1209
        %v1322 = vmul.f32 %v1248, %v1248
        %v1323 = vmul.f32 %v1250, %v1250
        %v1324 = vadd.f32 %v1292, %v1293
        %v1325 = vadd.f32 %v1324, %v1294
        %v1326 = vadd.f32 %v1325, %v1295
        %v1327 = vadd.f32 %v1326, %v1296
        %v1328 = vadd.f32 %v1327, %v1297
        %v1329 = vadd.f32 %v1328, %v1298
        %v1330 = vadd.f32 %v1329, %v1299
        %v1331 = vadd.f32 %v1330, %v1300
        %v1332 = vadd.f32 %v1331, %v1301
        %v1333 = vadd.f32 %v1332, %v1302
        %v1334 = vadd.f32 %v1333, %v1303
        %v1335 = vadd.f32 %v1334, %v1304
        %v1336 = vadd.f32 %v1335, %v1305
        %v1337 = vadd.f32 %v1336, %v1306
        %v1338 = vadd.f32 %v1337, %v1307
        %v1339 = vadd.f32 %v1338, %v1308
        %v1340 = vadd.f32 %v1339, %v1309
        %v1341 = vadd.f32 %v1340, %v1310
        %v1342 = vadd.f32 %v1341, %v1311
        %v1343 = vadd.f32 %v1342, %v1312
        %v1344 = vadd.f32 %v1343, %v1313
        %v1345 = vadd.f32 %v1344, %v1314
        %v1346 = vadd.f32 %v1345, %v1315
        %v1347 = vadd.f32 %v1346, %v1316
        %v1348 = vadd.f32 %v1347, %v1317
        %v1349 = vadd.f32 %v1348, %v1318
        %v1350 = vadd.f32 %v1349, %v1319
        %v1351 = vadd.f32 %v1350, %v1320
        %v1352 = vadd.f32 %v1351, %v1321
        %v1353 = vadd.f32 %v1352, %v1322
        %v1354 = vadd.f32 %v1353, %v1323
        %1355 = vadd.xlane.f32.xlu0 %v1354
        %v1356 = vpop.xlane.xlu0 %1355
        %v1357 = vadd.f32 %v1291, %v1356
        %1358 = vst.msk [vmem:[#allocation3] sm:$0xff] %vm1289, %v1357
        // Predicated region
        $region37: #{tpu_custom_call.1} parent=27 // pred_check
          %p1359 = pneg %p197
        $region38: #{tpu_custom_call.1} parent=27 // pred_check_branch
          %1361 = sbr.rel (%p1359) target = $region40
        $region39: #{tpu_custom_call.1} parent=27 // pred_region
          %v1362 = vld [vmem:[#allocation2] sm:$0xff]
          %1363 = vst.msk [vmem:[%s195] sm:$0xff] %vm1289, %v1362
          %v1364 = vld [vmem:[#allocation3] sm:$0xff]
          %1366 = vrot.lane.b32.xlu0 %v1364, 1
          %v1367 = vpop.permute.xlu0 %1366
          %vm1369 = vcmask 15368
          %1370 = vst.msk [vmem:[%s195] sm:$0xff] %vm1369, %v1367
        $region40: #{tpu_custom_call.1} parent=27 // pred_fallthru
          _
        %p1371 = scmp.lt.s32.totalorder %s21, 1
        %s1372 = scalar_select %p1371, %s21, 1
        %p1373 = scmp.lt.s32.totalorder %s22, 0
        %s1374 = scalar_select %p1373, %s22, 0
        %s1375 = sadd.s32 %s1374, %s1372
        %s1376 = smul.addr %s1375, 8
        %s1377 = scalar_lea.vmem %s2, %s1376
        // Predicated region
        $region41: #{tpu_custom_call.1} parent=27 // pred_check
          %p1378 = pneg %p106
        $region42: #{tpu_custom_call.1} parent=27 // pred_check_branch
          %1380 = sbr.rel (%p1378) target = $region44
        $region43: #{tpu_custom_call.1} parent=27 // pred_region
          _
        $region44: #{tpu_custom_call.1} parent=27 // pred_fallthru
          _
      $region28: #{tpu_custom_call.1} parent=5 // pred_fallthru
        _
      %p1381 = scmp.le.s32.totalorder 2, %s11
      // Predicated region
      $region45: #{tpu_custom_call.1} parent=5 // pred_check
        %p1382 = pneg %p1381
      $region46: #{tpu_custom_call.1} parent=5 // pred_check_branch
        %1384 = sbr.rel (%p1382) target = $region48
      $region47: #{tpu_custom_call.1} parent=5 // pred_region
        %s1385 = ssub.s32 %s11, 2
        // Predicated region
        $region49: #{tpu_custom_call.1} parent=47 // pred_check
          %p1386 = pneg %p112
        $region50: #{tpu_custom_call.1} parent=47 // pred_check_branch
          %1388 = sbr.rel (%p1386) target = $region52
        $region51: #{tpu_custom_call.1} parent=47 // pred_region
          %p1389 = scmp.lt.s32.totalorder %s24, 1
          %s1390 = scalar_select %p1389, %s24, 1
          %p1391 = scmp.lt.s32.totalorder %s25, 0
          %s1392 = scalar_select %p1391, %s25, 0
          %s1393 = sadd.s32 %s1392, %s1390
          %s1394 = smul.addr %s1393, 8
          %s1395 = scalar_lea.vmem %s2, %s1394
        $region52: #{tpu_custom_call.1} parent=47 // pred_fallthru
          _
      $region48: #{tpu_custom_call.1} parent=5 // pred_fallthru
        _
    $region6: #{tpu_custom_call.1} parent=1 // loop_footer
      %s15 = sadd.s32 1, %s11
    $region7: #{tpu_custom_call.1} parent=1 // loop_footer_branch
      %10 = sbr.rel target = $region3
    $region8: #{tpu_custom_call.1} parent=1 // loop_exit
      _
    %1396 = vsyncpa [#allocation5], 1
    %s1397 = scalar_lea.sflag [#allocation5], 1
    %1398 = vsyncpa %s1397, 1

</llo_original>
